<compile_context>
chip_gen: v6e
topology: v6e:2x2x1
jax: 0.10.0
libtpu: 0.0.40
codegen_flags: <defaults>
</compile_context>

<pallas_src>
import math

import jax
import jax.numpy as jnp
import numpy as np
from jax.experimental import pallas as pl
from jax.experimental.pallas import tpu as pltpu

# Conservative scoped-VMEM target that fits every generation (v7x has only
# 64 MiB physical VMEM per TensorCore; v5e/v6e have 128 MiB).
_VMEM_BUDGET_BYTES = 32 * 1024 * 1024


def _num_tensorcores_per_chip():
    """2 on v7x (dual TensorCore), 1 on v5e/v6e. Falls back to 1."""
    try:
        kind = jax.devices()[0].device_kind.lower()
    except Exception:  # pragma: no cover - backend not initialised
        return 1
    return 2 if ("v7" in kind or "7x" in kind) else 1


def _per_step_vmem_bytes(bt, seq, embed, num_heads, x_itemsize, c_itemsize):
    """Rough per-grid-step working-set estimate (f32 temporaries + IO)."""
    rows = bt * seq
    head_dim = embed // num_heads
    f32 = 4
    proj = rows * 3 * embed * f32                 # fused QKV output (f32)
    acc = rows * embed * f32                      # f32 output accumulator
    scores = 2 * bt * seq * seq * f32             # one head's scores + exp(p)
    head_tiles = 4 * bt * seq * head_dim * max(c_itemsize, f32)
    io = 2 * 2 * bt * seq * embed * x_itemsize    # double-buffered x / out blocks
    weights = 4 * embed * embed * c_itemsize + 4 * embed * f32
    return proj + acc + scores + head_tiles + io + weights


def _choose_batch_tile(batch, seq, embed, num_heads, x_itemsize, c_itemsize):
    n_tc = _num_tensorcores_per_chip()
    divisors = [d for d in range(1, batch + 1) if batch % d == 0]
    # Largest batch tile that still gives every TensorCore a grid step
    # (v7x: >= 2 steps; v5e/v6e: 1 step, i.e. the whole batch).
    cands = [d for d in divisors if batch // d >= n_tc] or [divisors[0]]
    bt = max(cands)

    budget = int(0.6 * _VMEM_BUDGET_BYTES)
    while bt > 1 and _per_step_vmem_bytes(
            bt, seq, embed, num_heads, x_itemsize, c_itemsize) > budget:
        bt = max(d for d in divisors if d < bt)
    if _per_step_vmem_bytes(bt, seq, embed, num_heads,
                            x_itemsize, c_itemsize) > budget:
        # TODO(synk): implement key-axis tiling + online softmax for this case.
        raise NotImplementedError(
            "sequence too long for the materialized-scores path; "
            "needs key-tiled online softmax")
    return bt


def _make_kernel(batch_tile, seq, embed, num_heads, compute_dtype):
    head_dim = embed // num_heads
    scale = 1.0 / math.sqrt(float(head_dim))
    rows = batch_tile * seq

    def kernel(x_ref, wqkv_ref, bqkv_ref, wf_ref, bf_ref, o_ref):
        # (Bt, S, E) -> (Bt*S, E): fold the batch tile into the row axis.
        x2d = x_ref[...].reshape(rows, embed)

        # Fused QKV projection: one 3E-lane MXU pass.  Operands in the compute
        # dtype (bf16 on bf16 models), accumulation in f32; bias stays f32.
        qkv = jnp.dot(x2d.astype(compute_dtype), wqkv_ref[...],
                      preferred_element_type=jnp.float32)
        qkv = qkv + bqkv_ref[...]

        wf = wf_ref[...]                                  # (E, E), compute dtype
        out_acc = jnp.zeros((rows, embed), jnp.float32)

        # Static per-head loop (num_heads is known at trace time).  Heads are
        # split by static lane slices of the fused projection and merged by
        # accumulating per-head output projections -> no (S <-> H) transpose
        # relayouts anywhere in the kernel.
        for h in range(num_heads):
            lo = h * head_dim
            q_h = (qkv[:, lo:lo + head_dim] * scale).astype(compute_dtype)
            k_h = qkv[:, embed + lo:embed + lo + head_dim].astype(compute_dtype)
            v_h = qkv[:, 2 * embed + lo:2 * embed + lo + head_dim].astype(compute_dtype)

            q_h = q_h.reshape(batch_tile, seq, head_dim)
            k_h = k_h.reshape(batch_tile, seq, head_dim)
            v_h = v_h.reshape(batch_tile, seq, head_dim)

            # scores: (Bt, Sq, Sk), contracting head_dim, f32 accumulate.
            s = jnp.einsum('bqd,bkd->bqk', q_h, k_h,
                           preferred_element_type=jnp.float32)

            # Numerically stable softmax; exact divide (EUP is idle here).
            m = jnp.max(s, axis=-1, keepdims=True)
            p = jnp.exp(s - m)
            denom = jnp.sum(p, axis=-1, keepdims=True)
            attn = (p / denom).astype(compute_dtype)

            # ctx: (Bt, Sq, D), contracting keys, f32 accumulate.
            ctx = jnp.einsum('bqk,bkd->bqd', attn, v_h,
                             preferred_element_type=jnp.float32)
            ctx2d = ctx.reshape(rows, head_dim).astype(compute_dtype)

            # Merge heads by accumulating per-head slices of the output
            # projection: (rows, D) @ (D, E), summed over heads in f32.
            out_acc = out_acc + jnp.dot(ctx2d, wf[lo:lo + head_dim, :],
                                        preferred_element_type=jnp.float32)

        # Output projection bias + residual, store in natural (Bt, S, E) layout.
        out = out_acc + bf_ref[...] + x2d.astype(jnp.float32)
        o_ref[...] = out.reshape(batch_tile, seq, embed).astype(o_ref.dtype)

    return kernel


def multi_head_self_attention(x, params, num_heads, compute_dtype=None):
    """x: [B, S, E].  params: wq,bq,wk,bk,wv,bv,wf,bf.

    Weights w* are (in_features, out_features) (i.e. PyTorch W.T); biases b*
    are (E,).  `compute_dtype` is the MXU operand dtype (defaults to x.dtype);
    pass jnp.bfloat16 on v6e/v7x to force single-pass MXU matmuls.  Biases and
    all accumulation stay in f32.
    """
    B, S, E = x.shape
    assert E % num_heads == 0, "embed_dim must be divisible by num_heads"
    cdt = jnp.dtype(compute_dtype) if compute_dtype is not None else x.dtype

    # Pack weights once in the wrapper: fused QKV weight (E, 3E) + bias (1, 3E).
    wqkv = jnp.concatenate([params["wq"], params["wk"], params["wv"]],
                           axis=1).astype(cdt)
    bqkv = jnp.concatenate([params["bq"], params["bk"], params["bv"]]
                           ).reshape(1, 3 * E).astype(jnp.float32)
    wf = params["wf"].astype(cdt)
    bf = params["bf"].reshape(1, E).astype(jnp.float32)

    Bt = _choose_batch_tile(B, S, E, num_heads,
                            x.dtype.itemsize, jnp.dtype(cdt).itemsize)
    grid = (B // Bt,)

    kernel = _make_kernel(Bt, S, E, num_heads, cdt)

    x_spec = pl.BlockSpec((Bt, S, E), lambda i: (i, 0, 0))
    wqkv_spec = pl.BlockSpec((E, 3 * E), lambda i: (0, 0))
    bqkv_spec = pl.BlockSpec((1, 3 * E), lambda i: (0, 0))
    wf_spec = pl.BlockSpec((E, E), lambda i: (0, 0))
    bf_spec = pl.BlockSpec((1, E), lambda i: (0, 0))
    o_spec = pl.BlockSpec((Bt, S, E), lambda i: (i, 0, 0))

    return pl.pallas_call(
        kernel,
        out_shape=jax.ShapeDtypeStruct((B, S, E), x.dtype),
        grid_spec=pltpu.PrefetchScalarGridSpec(
            num_scalar_prefetch=0,
            grid=grid,
            in_specs=[x_spec, wqkv_spec, bqkv_spec, wf_spec, bf_spec],
            out_specs=o_spec,
        ),
        compiler_params=pltpu.CompilerParams(
            dimension_semantics=("parallel",),
            vmem_limit_bytes=_VMEM_BUDGET_BYTES,
        ),
    )(x, wqkv, bqkv, wf, bf)


def _reference_np(x, params, num_heads):
    """float64 numpy reference mirroring the PyTorch forward exactly."""
    x64 = np.asarray(x, np.float64)
    p = {k: np.asarray(v, np.float64) for k, v in params.items()}
    B, S, E = x64.shape
    H = num_heads
    D = E // H

    def lin(t, w, b):
        return t @ w + b

    q = lin(x64, p["wq"], p["bq"]).reshape(B, S, H, D).transpose(0, 2, 1, 3)
    k = lin(x64, p["wk"], p["bk"]).reshape(B, S, H, D).transpose(0, 2, 1, 3)
    v = lin(x64, p["wv"], p["bv"]).reshape(B, S, H, D).transpose(0, 2, 1, 3)
    s = np.einsum('bhqd,bhkd->bhqk', q, k) / math.sqrt(D)
    s = s - s.max(axis=-1, keepdims=True)
    e = np.exp(s)
    attn = e / e.sum(axis=-1, keepdims=True)
    ctx = np.einsum('bhqk,bhkd->bhqd', attn, v).transpose(0, 2, 1, 3).reshape(B, S, E)
    return lin(ctx, p["wf"], p["bf"]) + x64


if __name__ == "__main__":
    B, S, E, H = 2, 8, 32, 4

    key = jax.random.PRNGKey(0)
    keys = jax.random.split(key, 9)
    bound = 1.0 / math.sqrt(E)   # matches nn.Linear default init scale

    # Weights stored as (in_features, out_features)  (== PyTorch W.T)
    params = {
        "wq": jax.random.uniform(keys[0], (E, E), jnp.float32, -bound, bound),
        "bq": jax.random.uniform(keys[1], (E,),   jnp.float32, -bound, bound),
        "wk": jax.random.uniform(keys[2], (E, E), jnp.float32, -bound, bound),
        "bk": jax.random.uniform(keys[3], (E,),   jnp.float32, -bound, bound),
        "wv": jax.random.uniform(keys[4], (E, E), jnp.float32, -bound, bound),
        "bv": jax.random.uniform(keys[5], (E,),   jnp.float32, -bound, bound),
        "wf": jax.random.uniform(keys[6], (E, E), jnp.float32, -bound, bound),
        "bf": jax.random.uniform(keys[7], (E,),   jnp.float32, -bound, bound),
    }
    x = jax.random.normal(keys[8], (B, S, E), jnp.float32)

    out = multi_head_self_attention(x, params, num_heads=H)
    out = jax.block_until_ready(out)

    ref = _reference_np(np.asarray(x),
                        {k: np.asarray(v) for k, v in params.items()}, H)
    # Exact softmax divide + f32 accumulation everywhere -> tight tolerance
    # (restored from the previous 2e-2).
    np.testing.assert_allclose(np.asarray(out, np.float64), ref,
                               rtol=5e-4, atol=5e-4)

    print("KERNEL_OK")
</pallas_src>

<mosaic_0001>
module attributes {stable_mosaic.version = 11 : i64} {
  func.func @kernel(%arg0: i32, %arg1: memref<2x8x32xf32, #tpu.memory_space<vmem>>, %arg2: memref<32x96xf32, #tpu.memory_space<vmem>>, %arg3: memref<1x96xf32, #tpu.memory_space<vmem>>, %arg4: memref<32x32xf32, #tpu.memory_space<vmem>>, %arg5: memref<1x32xf32, #tpu.memory_space<vmem>>, %arg6: memref<2x8x32xf32, #tpu.memory_space<vmem>>) attributes {dimension_semantics = [#tpu.dimension_semantics<parallel>], iteration_bounds = array<i64: 1>, scalar_prefetch = 0 : i64, scratch_operands = 0 : i64, tpu.core_type = #tpu.core_type<tc>, window_params = [{transform_indices = @transform_0, window_bounds = array<i64: 2, 8, 32>}, {pipeline_mode = #tpu.pipeline_mode<synchronous>, transform_indices = @transform_1, window_bounds = array<i64: 32, 96>}, {pipeline_mode = #tpu.pipeline_mode<synchronous>, transform_indices = @transform_2, window_bounds = array<i64: 1, 96>}, {pipeline_mode = #tpu.pipeline_mode<synchronous>, transform_indices = @transform_3, window_bounds = array<i64: 32, 32>}, {pipeline_mode = #tpu.pipeline_mode<synchronous>, transform_indices = @transform_4, window_bounds = array<i64: 1, 32>}, {transform_indices = @transform_5, window_bounds = array<i64: 2, 8, 32>}]} {
    %c0 = arith.constant 0 : index
    %c0_0 = arith.constant 0 : index
    %c0_1 = arith.constant 0 : index
    %0 = vector.load %arg1[%c0, %c0_0, %c0_1] : memref<2x8x32xf32, #tpu.memory_space<vmem>>, vector<2x8x32xf32>
    %1 = vector.shape_cast %0 : vector<2x8x32xf32> to vector<16x32xf32>
    %c0_2 = arith.constant 0 : index
    %c0_3 = arith.constant 0 : index
    %2 = vector.load %arg2[%c0_2, %c0_3] : memref<32x96xf32, #tpu.memory_space<vmem>>, vector<32x96xf32>
    %cst = arith.constant dense<0.000000e+00> : vector<16x96xf32>
    %3 = tpu.matmul %1, %2, %cst {dimension_numbers = #tpu.dot_dimension_numbers<[1], [0], [0], [1], [0, 0, 1, 1], [], []>} : vector<16x32xf32>, vector<32x96xf32>, vector<16x96xf32> -> vector<16x96xf32>
    %c0_4 = arith.constant 0 : index
    %c0_5 = arith.constant 0 : index
    %4 = vector.load %arg3[%c0_4, %c0_5] : memref<1x96xf32, #tpu.memory_space<vmem>>, vector<1x96xf32>
    %5 = vector.broadcast %4 : vector<1x96xf32> to vector<16x96xf32>
    %6 = arith.addf %3, %5 : vector<16x96xf32>
    %c0_6 = arith.constant 0 : index
    %c0_7 = arith.constant 0 : index
    %7 = vector.load %arg4[%c0_6, %c0_7] : memref<32x32xf32, #tpu.memory_space<vmem>>, vector<32x32xf32>
    %cst_8 = arith.constant 0.000000e+00 : f32
    %8 = vector.broadcast %cst_8 : f32 to vector<16x32xf32>
    %9 = vector.extract_strided_slice %6 {offsets = [0, 0], sizes = [16, 8], strides = [1, 1]} : vector<16x96xf32> to vector<16x8xf32>
    %cst_9 = arith.constant 0.353553385 : f32
    %10 = vector.broadcast %cst_9 : f32 to vector<16x8xf32>
    %11 = arith.mulf %9, %10 : vector<16x8xf32>
    %12 = vector.extract_strided_slice %6 {offsets = [0, 32], sizes = [16, 8], strides = [1, 1]} : vector<16x96xf32> to vector<16x8xf32>
    %13 = vector.extract_strided_slice %6 {offsets = [0, 64], sizes = [16, 8], strides = [1, 1]} : vector<16x96xf32> to vector<16x8xf32>
    %14 = vector.shape_cast %11 : vector<16x8xf32> to vector<2x8x8xf32>
    %15 = vector.shape_cast %12 : vector<16x8xf32> to vector<2x8x8xf32>
    %16 = vector.shape_cast %13 : vector<16x8xf32> to vector<2x8x8xf32>
    "tpu.trace_start"() <{level = 10 : i32, message = "bqd,bkd->bqk"}> : () -> ()
    %cst_10 = arith.constant dense<0.000000e+00> : vector<2x8x8xf32>
    %17 = tpu.matmul %14, %15, %cst_10 {dimension_numbers = #tpu.dot_dimension_numbers<[2], [2], [1], [1], [0, 0, 0, 1, 1, 1], [0], [0]>} : vector<2x8x8xf32>, vector<2x8x8xf32>, vector<2x8x8xf32> -> vector<2x8x8xf32>
    "tpu.trace_stop"() : () -> ()
    %cst_11 = arith.constant dense<0xFF800000> : vector<2x8xf32>
    %18 = vector.multi_reduction <maximumf>, %17, %cst_11 [2] : vector<2x8x8xf32> to vector<2x8xf32>
    %19 = vector.shape_cast %18 : vector<2x8xf32> to vector<2x8x1xf32>
    %20 = vector.broadcast %19 : vector<2x8x1xf32> to vector<2x8x8xf32>
    %21 = arith.subf %17, %20 : vector<2x8x8xf32>
    %22 = math.exp %21 : vector<2x8x8xf32>
    %cst_12 = arith.constant dense<0.000000e+00> : vector<2x8xf32>
    %23 = vector.multi_reduction <add>, %22, %cst_12 [2] : vector<2x8x8xf32> to vector<2x8xf32>
    %24 = vector.shape_cast %23 : vector<2x8xf32> to vector<2x8x1xf32>
    %25 = vector.broadcast %24 : vector<2x8x1xf32> to vector<2x8x8xf32>
    %26 = arith.divf %22, %25 : vector<2x8x8xf32>
    "tpu.trace_start"() <{level = 10 : i32, message = "bqk,bkd->bqd"}> : () -> ()
    %cst_13 = arith.constant dense<0.000000e+00> : vector<2x8x8xf32>
    %27 = tpu.matmul %26, %16, %cst_13 {dimension_numbers = #tpu.dot_dimension_numbers<[2], [1], [1], [2], [0, 0, 0, 1, 1, 2], [0], [0]>} : vector<2x8x8xf32>, vector<2x8x8xf32>, vector<2x8x8xf32> -> vector<2x8x8xf32>
    "tpu.trace_stop"() : () -> ()
    %28 = vector.shape_cast %27 : vector<2x8x8xf32> to vector<16x8xf32>
    %29 = vector.extract_strided_slice %7 {offsets = [0, 0], sizes = [8, 32], strides = [1, 1]} : vector<32x32xf32> to vector<8x32xf32>
    %cst_14 = arith.constant dense<0.000000e+00> : vector<16x32xf32>
    %30 = tpu.matmul %28, %29, %cst_14 {dimension_numbers = #tpu.dot_dimension_numbers<[1], [0], [0], [1], [0, 0, 1, 1], [], []>} : vector<16x8xf32>, vector<8x32xf32>, vector<16x32xf32> -> vector<16x32xf32>
    %31 = arith.addf %8, %30 : vector<16x32xf32>
    %32 = vector.extract_strided_slice %6 {offsets = [0, 8], sizes = [16, 8], strides = [1, 1]} : vector<16x96xf32> to vector<16x8xf32>
    %cst_15 = arith.constant 0.353553385 : f32
    %33 = vector.broadcast %cst_15 : f32 to vector<16x8xf32>
    %34 = arith.mulf %32, %33 : vector<16x8xf32>
    %35 = vector.extract_strided_slice %6 {offsets = [0, 40], sizes = [16, 8], strides = [1, 1]} : vector<16x96xf32> to vector<16x8xf32>
    %36 = vector.extract_strided_slice %6 {offsets = [0, 72], sizes = [16, 8], strides = [1, 1]} : vector<16x96xf32> to vector<16x8xf32>
    %37 = vector.shape_cast %34 : vector<16x8xf32> to vector<2x8x8xf32>
    %38 = vector.shape_cast %35 : vector<16x8xf32> to vector<2x8x8xf32>
    %39 = vector.shape_cast %36 : vector<16x8xf32> to vector<2x8x8xf32>
    "tpu.trace_start"() <{level = 10 : i32, message = "bqd,bkd->bqk"}> : () -> ()
    %cst_16 = arith.constant dense<0.000000e+00> : vector<2x8x8xf32>
    %40 = tpu.matmul %37, %38, %cst_16 {dimension_numbers = #tpu.dot_dimension_numbers<[2], [2], [1], [1], [0, 0, 0, 1, 1, 1], [0], [0]>} : vector<2x8x8xf32>, vector<2x8x8xf32>, vector<2x8x8xf32> -> vector<2x8x8xf32>
    "tpu.trace_stop"() : () -> ()
    %cst_17 = arith.constant dense<0xFF800000> : vector<2x8xf32>
    %41 = vector.multi_reduction <maximumf>, %40, %cst_17 [2] : vector<2x8x8xf32> to vector<2x8xf32>
    %42 = vector.shape_cast %41 : vector<2x8xf32> to vector<2x8x1xf32>
    %43 = vector.broadcast %42 : vector<2x8x1xf32> to vector<2x8x8xf32>
    %44 = arith.subf %40, %43 : vector<2x8x8xf32>
    %45 = math.exp %44 : vector<2x8x8xf32>
    %cst_18 = arith.constant dense<0.000000e+00> : vector<2x8xf32>
    %46 = vector.multi_reduction <add>, %45, %cst_18 [2] : vector<2x8x8xf32> to vector<2x8xf32>
    %47 = vector.shape_cast %46 : vector<2x8xf32> to vector<2x8x1xf32>
    %48 = vector.broadcast %47 : vector<2x8x1xf32> to vector<2x8x8xf32>
    %49 = arith.divf %45, %48 : vector<2x8x8xf32>
    "tpu.trace_start"() <{level = 10 : i32, message = "bqk,bkd->bqd"}> : () -> ()
    %cst_19 = arith.constant dense<0.000000e+00> : vector<2x8x8xf32>
    %50 = tpu.matmul %49, %39, %cst_19 {dimension_numbers = #tpu.dot_dimension_numbers<[2], [1], [1], [2], [0, 0, 0, 1, 1, 2], [0], [0]>} : vector<2x8x8xf32>, vector<2x8x8xf32>, vector<2x8x8xf32> -> vector<2x8x8xf32>
    "tpu.trace_stop"() : () -> ()
    %51 = vector.shape_cast %50 : vector<2x8x8xf32> to vector<16x8xf32>
    %52 = vector.extract_strided_slice %7 {offsets = [8, 0], sizes = [8, 32], strides = [1, 1]} : vector<32x32xf32> to vector<8x32xf32>
    %cst_20 = arith.constant dense<0.000000e+00> : vector<16x32xf32>
    %53 = tpu.matmul %51, %52, %cst_20 {dimension_numbers = #tpu.dot_dimension_numbers<[1], [0], [0], [1], [0, 0, 1, 1], [], []>} : vector<16x8xf32>, vector<8x32xf32>, vector<16x32xf32> -> vector<16x32xf32>
    %54 = arith.addf %31, %53 : vector<16x32xf32>
    %55 = vector.extract_strided_slice %6 {offsets = [0, 16], sizes = [16, 8], strides = [1, 1]} : vector<16x96xf32> to vector<16x8xf32>
    %cst_21 = arith.constant 0.353553385 : f32
    %56 = vector.broadcast %cst_21 : f32 to vector<16x8xf32>
    %57 = arith.mulf %55, %56 : vector<16x8xf32>
    %58 = vector.extract_strided_slice %6 {offsets = [0, 48], sizes = [16, 8], strides = [1, 1]} : vector<16x96xf32> to vector<16x8xf32>
    %59 = vector.extract_strided_slice %6 {offsets = [0, 80], sizes = [16, 8], strides = [1, 1]} : vector<16x96xf32> to vector<16x8xf32>
    %60 = vector.shape_cast %57 : vector<16x8xf32> to vector<2x8x8xf32>
    %61 = vector.shape_cast %58 : vector<16x8xf32> to vector<2x8x8xf32>
    %62 = vector.shape_cast %59 : vector<16x8xf32> to vector<2x8x8xf32>
    "tpu.trace_start"() <{level = 10 : i32, message = "bqd,bkd->bqk"}> : () -> ()
    %cst_22 = arith.constant dense<0.000000e+00> : vector<2x8x8xf32>
    %63 = tpu.matmul %60, %61, %cst_22 {dimension_numbers = #tpu.dot_dimension_numbers<[2], [2], [1], [1], [0, 0, 0, 1, 1, 1], [0], [0]>} : vector<2x8x8xf32>, vector<2x8x8xf32>, vector<2x8x8xf32> -> vector<2x8x8xf32>
    "tpu.trace_stop"() : () -> ()
    %cst_23 = arith.constant dense<0xFF800000> : vector<2x8xf32>
    %64 = vector.multi_reduction <maximumf>, %63, %cst_23 [2] : vector<2x8x8xf32> to vector<2x8xf32>
    %65 = vector.shape_cast %64 : vector<2x8xf32> to vector<2x8x1xf32>
    %66 = vector.broadcast %65 : vector<2x8x1xf32> to vector<2x8x8xf32>
    %67 = arith.subf %63, %66 : vector<2x8x8xf32>
    %68 = math.exp %67 : vector<2x8x8xf32>
    %cst_24 = arith.constant dense<0.000000e+00> : vector<2x8xf32>
    %69 = vector.multi_reduction <add>, %68, %cst_24 [2] : vector<2x8x8xf32> to vector<2x8xf32>
    %70 = vector.shape_cast %69 : vector<2x8xf32> to vector<2x8x1xf32>
    %71 = vector.broadcast %70 : vector<2x8x1xf32> to vector<2x8x8xf32>
    %72 = arith.divf %68, %71 : vector<2x8x8xf32>
    "tpu.trace_start"() <{level = 10 : i32, message = "bqk,bkd->bqd"}> : () -> ()
    %cst_25 = arith.constant dense<0.000000e+00> : vector<2x8x8xf32>
    %73 = tpu.matmul %72, %62, %cst_25 {dimension_numbers = #tpu.dot_dimension_numbers<[2], [1], [1], [2], [0, 0, 0, 1, 1, 2], [0], [0]>} : vector<2x8x8xf32>, vector<2x8x8xf32>, vector<2x8x8xf32> -> vector<2x8x8xf32>
    "tpu.trace_stop"() : () -> ()
    %74 = vector.shape_cast %73 : vector<2x8x8xf32> to vector<16x8xf32>
    %75 = vector.extract_strided_slice %7 {offsets = [16, 0], sizes = [8, 32], strides = [1, 1]} : vector<32x32xf32> to vector<8x32xf32>
    %cst_26 = arith.constant dense<0.000000e+00> : vector<16x32xf32>
    %76 = tpu.matmul %74, %75, %cst_26 {dimension_numbers = #tpu.dot_dimension_numbers<[1], [0], [0], [1], [0, 0, 1, 1], [], []>} : vector<16x8xf32>, vector<8x32xf32>, vector<16x32xf32> -> vector<16x32xf32>
    %77 = arith.addf %54, %76 : vector<16x32xf32>
    %78 = vector.extract_strided_slice %6 {offsets = [0, 24], sizes = [16, 8], strides = [1, 1]} : vector<16x96xf32> to vector<16x8xf32>
    %cst_27 = arith.constant 0.353553385 : f32
    %79 = vector.broadcast %cst_27 : f32 to vector<16x8xf32>
    %80 = arith.mulf %78, %79 : vector<16x8xf32>
    %81 = vector.extract_strided_slice %6 {offsets = [0, 56], sizes = [16, 8], strides = [1, 1]} : vector<16x96xf32> to vector<16x8xf32>
    %82 = vector.extract_strided_slice %6 {offsets = [0, 88], sizes = [16, 8], strides = [1, 1]} : vector<16x96xf32> to vector<16x8xf32>
    %83 = vector.shape_cast %80 : vector<16x8xf32> to vector<2x8x8xf32>
    %84 = vector.shape_cast %81 : vector<16x8xf32> to vector<2x8x8xf32>
    %85 = vector.shape_cast %82 : vector<16x8xf32> to vector<2x8x8xf32>
    "tpu.trace_start"() <{level = 10 : i32, message = "bqd,bkd->bqk"}> : () -> ()
    %cst_28 = arith.constant dense<0.000000e+00> : vector<2x8x8xf32>
    %86 = tpu.matmul %83, %84, %cst_28 {dimension_numbers = #tpu.dot_dimension_numbers<[2], [2], [1], [1], [0, 0, 0, 1, 1, 1], [0], [0]>} : vector<2x8x8xf32>, vector<2x8x8xf32>, vector<2x8x8xf32> -> vector<2x8x8xf32>
    "tpu.trace_stop"() : () -> ()
    %cst_29 = arith.constant dense<0xFF800000> : vector<2x8xf32>
    %87 = vector.multi_reduction <maximumf>, %86, %cst_29 [2] : vector<2x8x8xf32> to vector<2x8xf32>
    %88 = vector.shape_cast %87 : vector<2x8xf32> to vector<2x8x1xf32>
    %89 = vector.broadcast %88 : vector<2x8x1xf32> to vector<2x8x8xf32>
    %90 = arith.subf %86, %89 : vector<2x8x8xf32>
    %91 = math.exp %90 : vector<2x8x8xf32>
    %cst_30 = arith.constant dense<0.000000e+00> : vector<2x8xf32>
    %92 = vector.multi_reduction <add>, %91, %cst_30 [2] : vector<2x8x8xf32> to vector<2x8xf32>
    %93 = vector.shape_cast %92 : vector<2x8xf32> to vector<2x8x1xf32>
    %94 = vector.broadcast %93 : vector<2x8x1xf32> to vector<2x8x8xf32>
    %95 = arith.divf %91, %94 : vector<2x8x8xf32>
    "tpu.trace_start"() <{level = 10 : i32, message = "bqk,bkd->bqd"}> : () -> ()
    %cst_31 = arith.constant dense<0.000000e+00> : vector<2x8x8xf32>
    %96 = tpu.matmul %95, %85, %cst_31 {dimension_numbers = #tpu.dot_dimension_numbers<[2], [1], [1], [2], [0, 0, 0, 1, 1, 2], [0], [0]>} : vector<2x8x8xf32>, vector<2x8x8xf32>, vector<2x8x8xf32> -> vector<2x8x8xf32>
    "tpu.trace_stop"() : () -> ()
    %97 = vector.shape_cast %96 : vector<2x8x8xf32> to vector<16x8xf32>
    %98 = vector.extract_strided_slice %7 {offsets = [24, 0], sizes = [8, 32], strides = [1, 1]} : vector<32x32xf32> to vector<8x32xf32>
    %cst_32 = arith.constant dense<0.000000e+00> : vector<16x32xf32>
    %99 = tpu.matmul %97, %98, %cst_32 {dimension_numbers = #tpu.dot_dimension_numbers<[1], [0], [0], [1], [0, 0, 1, 1], [], []>} : vector<16x8xf32>, vector<8x32xf32>, vector<16x32xf32> -> vector<16x32xf32>
    %100 = arith.addf %77, %99 : vector<16x32xf32>
    %c0_33 = arith.constant 0 : index
    %c0_34 = arith.constant 0 : index
    %101 = vector.load %arg5[%c0_33, %c0_34] : memref<1x32xf32, #tpu.memory_space<vmem>>, vector<1x32xf32>
    %102 = vector.broadcast %101 : vector<1x32xf32> to vector<16x32xf32>
    %103 = arith.addf %100, %102 : vector<16x32xf32>
    %104 = arith.addf %103, %1 : vector<16x32xf32>
    %105 = vector.shape_cast %104 : vector<16x32xf32> to vector<2x8x32xf32>
    %c0_35 = arith.constant 0 : index
    %c0_36 = arith.constant 0 : index
    %c0_37 = arith.constant 0 : index
    %106 = vector.load %arg6[%c0_35, %c0_36, %c0_37] : memref<2x8x32xf32, #tpu.memory_space<vmem>>, vector<2x8x32xf32>
    tpu.vector_store %arg6[%c0_35, %c0_36, %c0_37], %105 {strides = array<i32>} : memref<2x8x32xf32, #tpu.memory_space<vmem>>, vector<2x8x32xf32>,
    return
  }
  func.func @transform_0(%arg0: i32) -> (i32, i32, i32) {
    %c0_i32 = arith.constant 0 : i32
    %c0_i32_0 = arith.constant 0 : i32
    %c0_i32_1 = arith.constant 0 : i32
    return %arg0, %c0_i32, %c0_i32_0 : i32, i32, i32
  }
  func.func @transform_1(%arg0: i32) -> (i32, i32) {
    %c0_i32 = arith.constant 0 : i32
    %c0_i32_0 = arith.constant 0 : i32
    %c0_i32_1 = arith.constant 0 : i32
    return %c0_i32, %c0_i32_0 : i32, i32
  }
  func.func @transform_2(%arg0: i32) -> (i32, i32) {
    %c0_i32 = arith.constant 0 : i32
    %c0_i32_0 = arith.constant 0 : i32
    %c0_i32_1 = arith.constant 0 : i32
    return %c0_i32, %c0_i32_0 : i32, i32
  }
  func.func @transform_3(%arg0: i32) -> (i32, i32) {
    %c0_i32 = arith.constant 0 : i32
    %c0_i32_0 = arith.constant 0 : i32
    %c0_i32_1 = arith.constant 0 : i32
    return %c0_i32, %c0_i32_0 : i32, i32
  }
  func.func @transform_4(%arg0: i32) -> (i32, i32) {
    %c0_i32 = arith.constant 0 : i32
    %c0_i32_0 = arith.constant 0 : i32
    %c0_i32_1 = arith.constant 0 : i32
    return %c0_i32, %c0_i32_0 : i32, i32
  }
  func.func @transform_5(%arg0: i32) -> (i32, i32, i32) {
    %c0_i32 = arith.constant 0 : i32
    %c0_i32_0 = arith.constant 0 : i32
    %c0_i32_1 = arith.constant 0 : i32
    return %arg0, %c0_i32, %c0_i32_0 : i32, i32, i32
  }
}

</mosaic_0001>

<llo_original>
// kernel: tpu_custom_call.1
$region0: #{tpu_custom_call.1}
  #allocation0 [shape = 'u32[]', space=smem, size = 0x4, offset = 0x4, fixed_abs, tag = 'smem constant byte address 0x4 - core index']
  #allocation1 [shape = 'u32[144,128]{1,0:T(1,128)}', space=vmem, size = 0x12000, scoped, tag = 'internal scratch']
  %s0 = inlined_call_operand.hbm [shape: f32[2,8,32], index: 0, kind: input, shape index: {}]
  %s1 = inlined_call_operand.hbm [shape: f32[32,96], index: 1, kind: input, shape index: {}]
  %s2 = inlined_call_operand.vmem [shape: f32[1,96], index: 2, kind: input, shape index: {}]
  %s3 = inlined_call_operand.hbm [shape: f32[32,32], index: 3, kind: input, shape index: {}]
  %s4 = inlined_call_operand.vmem [shape: f32[1,32], index: 4, kind: input, shape index: {}]
  %s5 = inlined_call_operand.hbm [shape: f32[2,8,32], index: 5, kind: output, shape index: {}]
  %s6 = sld [smem:[#allocation0]]
  $region42: #{tpu_custom_call.1} parent=0
    _
  %s8 = ssub.s32 1, %s6
  %s9 = scalar_select 0, %s8, %s6
  $region1: #{tpu_custom_call.1} parent=0
    #allocation2 [shape = 'u8[8192]{0}', space=vmem, size = 0x2000, scoped, tag = 'input window, operand 0, single buffered']
    #allocation3 [shape = 's32[1]{0}', space=sflag, size = 0x4, scoped, tag = 'scoped memory for tpu_custom_call.1']
    #allocation4 [shape = 's32[1]{0}', space=sflag, size = 0x4, scoped, tag = 'scoped memory for tpu_custom_call.1']
    #allocation5 [shape = 'u8[16384]{0}', space=vmem, size = 0x4000, scoped, tag = 'input window, operand 1, single buffered']
    #allocation6 [shape = 's32[1]{0}', space=sflag, size = 0x4, scoped, tag = 'scoped memory for tpu_custom_call.1']
    #allocation7 [shape = 'u8[16384]{0}', space=vmem, size = 0x4000, scoped, tag = 'input window, operand 3, single buffered']
    #allocation8 [shape = 'u8[8192]{0}', space=vmem, size = 0x2000, scoped, tag = 'output window, operand 0, single buffered']
    %10 = vsyncpa [#allocation3], 0
    %11 = vsyncpa [#allocation6], 0
    %12 = vsyncpa [#allocation4], 0
    // Predicated region
    $region2: #{tpu_custom_call.1} parent=1 // pred_check
      _
    $region3: #{tpu_custom_call.1} parent=1 // pred_check_branch
      %14 = sbr.rel (0) target = $region5
    $region4: #{tpu_custom_call.1} parent=1 // pred_region
      %s16 = ssub.s32 256, 256
      %17 = vsyncadd [#allocation3], %s16
      %s18 = sshll.u32 [#allocation2], 4
      %s19 = int_to_ptr.vmem [resolvable:$true] %s18
      %24 = dma.hbm_to_vmem [thread:$0]  %s0, 256, %s19, [#allocation3], 128, 128, 8
    $region5: #{tpu_custom_call.1} parent=1 // pred_fallthru
      _
    // Predicated region
    $region6: #{tpu_custom_call.1} parent=1 // pred_check
      _
    $region7: #{tpu_custom_call.1} parent=1 // pred_check_branch
      %26 = sbr.rel (0) target = $region9
    $region8: #{tpu_custom_call.1} parent=1 // pred_region
      %s28 = ssub.s32 512, 512
      %29 = vsyncadd [#allocation6], %s28
      %s30 = sshll.u32 [#allocation5], 4
      %s31 = int_to_ptr.vmem [resolvable:$true] %s30
      %36 = dma.hbm_to_vmem [thread:$0]  %s1, 512, %s31, [#allocation6], 128, 128, 8
    $region9: #{tpu_custom_call.1} parent=1 // pred_fallthru
      _
    // Predicated region
    $region10: #{tpu_custom_call.1} parent=1 // pred_check
      _
    $region11: #{tpu_custom_call.1} parent=1 // pred_check_branch
      %38 = sbr.rel (0) target = $region13
    $region12: #{tpu_custom_call.1} parent=1 // pred_region
      _
    $region13: #{tpu_custom_call.1} parent=1 // pred_fallthru
      _
    // Predicated region
    $region14: #{tpu_custom_call.1} parent=1 // pred_check
      _
    $region15: #{tpu_custom_call.1} parent=1 // pred_check_branch
      %40 = sbr.rel (0) target = $region17
    $region16: #{tpu_custom_call.1} parent=1 // pred_region
      %s42 = ssub.s32 512, 512
      %43 = vsyncadd [#allocation6], %s42
      %s44 = sshll.u32 [#allocation7], 4
      %s45 = int_to_ptr.vmem [resolvable:$true] %s44
      %50 = dma.hbm_to_vmem [thread:$0]  %s3, 512, %s45, [#allocation6], 128, 128, 8
    $region17: #{tpu_custom_call.1} parent=1 // pred_fallthru
      _
    // Predicated region
    $region18: #{tpu_custom_call.1} parent=1 // pred_check
      _
    $region19: #{tpu_custom_call.1} parent=1 // pred_check_branch
      %52 = sbr.rel (0) target = $region21
    $region20: #{tpu_custom_call.1} parent=1 // pred_region
      _
    $region21: #{tpu_custom_call.1} parent=1 // pred_fallthru
      _
    // Predicated region
    $region22: #{tpu_custom_call.1} parent=1 // pred_check
      _
    $region23: #{tpu_custom_call.1} parent=1 // pred_check_branch
      %54 = sbr.rel (0) target = $region25
    $region24: #{tpu_custom_call.1} parent=1 // pred_region
      %55 = dma.done [#allocation3], 256
    $region25: #{tpu_custom_call.1} parent=1 // pred_fallthru
      _
    // Predicated region
    $region26: #{tpu_custom_call.1} parent=1 // pred_check
      _
    $region27: #{tpu_custom_call.1} parent=1 // pred_check_branch
      %57 = sbr.rel (0) target = $region29
    $region28: #{tpu_custom_call.1} parent=1 // pred_region
      %58 = dma.done [#allocation6], 512
    $region29: #{tpu_custom_call.1} parent=1 // pred_fallthru
      _
    // Predicated region
    $region30: #{tpu_custom_call.1} parent=1 // pred_check
      _
    $region31: #{tpu_custom_call.1} parent=1 // pred_check_branch
      %60 = sbr.rel (0) target = $region33
    $region32: #{tpu_custom_call.1} parent=1 // pred_region
      %61 = dma.done [#allocation6], 512
    $region33: #{tpu_custom_call.1} parent=1 // pred_fallthru
      _
    %v62 = vld [vmem:[#allocation2] sm:$0xff]
    %v63 = vld [vmem:[#allocation2 + $0x8] sm:$0xff]
    %v64 = vld [vmem:[#allocation5] sm:$0xff]
    %v65 = vld [vmem:[#allocation5 + $0x8] sm:$0xff]
    %v66 = vld [vmem:[#allocation5 + $0x10] sm:$0xff]
    %v67 = vld [vmem:[#allocation5 + $0x18] sm:$0xff]
    %v68 = vld [vmem:[%s2] sm:$0x1]
    %v70 = vlaneseq
    %v71 = vshrl.u32 %v70, 7
    %v72 = vsub.s32 0, %v71
    %v73 = vrot.slane %v68, %v72
    %vm75 = vcmask 261120
    %v77 = vsel %vm75, %v62, 0
    %v80 = vsel %vm75, %v63, 0
    %82 = vmatprep.subr.mxu0 0.0
    %83 = vmatpush1.msra.mxu0 0.0
    %84 = vmatprep.subr.mxu0 0.0
    %85 = vmatpush1.msra.mxu0 0.0
    %86 = vmatprep.subr.mxu0 0.0
    %87 = vmatpush1.msra.mxu0 0.0
    %88 = vmatprep.subr.mxu0 0.0
    %89 = vmatpush1.msra.mxu0 0.0
    %90 = vmatprep.subr.mxu0 0.0
    %91 = vmatpush1.msra.mxu0 0.0
    %92 = vmatprep.subr.mxu0 0.0
    %93 = vmatpush1.msra.mxu0 0.0
    %94 = vmatprep.subr.mxu0 0.0
    %95 = vmatpush1.msra.mxu0 0.0
    %96 = vmatprep.subr.mxu0 0.0
    %97 = vmatpush1.msra.mxu0 0.0
    %98 = vmatprep.subr.mxu0 0.0
    %99 = vmatpush1.msra.mxu0 0.0
    %100 = vmatprep.subr.mxu0 0.0
    %101 = vmatpush1.msra.mxu0 0.0
    %102 = vmatprep.subr.mxu0 0.0
    %103 = vmatpush1.msra.mxu0 0.0
    %104 = vmatprep.subr.mxu0 0.0
    %105 = vmatpush1.msra.mxu0 0.0
    %106 = vmatprep.subr.mxu0 0.0
    %107 = vmatpush1.msra.mxu0 %v67
    %108 = vmatprep.subr.mxu0 0.0
    %109 = vmatpush1.msra.mxu0 %v66
    %110 = vmatprep.subr.mxu0 0.0
    %111 = vmatpush1.msra.mxu0 %v65
    %112 = vmatprep.subr.mxu0 0.0
    %113 = vmatpush1.msra.mxu0 %v64
    %114 = vmatprep.subr.mxu0 0.0
    %115 = vmatpush2.msra.mxu0 0.0
    %116 = vmatprep.subr.mxu0 0.0
    %117 = vmatpush2.msra.mxu0 0.0
    %118 = vmatprep.subr.mxu0 0.0
    %119 = vmatpush2.msra.mxu0 0.0
    %120 = vmatprep.subr.mxu0 0.0
    %121 = vmatpush2.msra.mxu0 0.0
    %122 = vmatprep.subr.mxu0 0.0
    %123 = vmatpush2.msra.mxu0 0.0
    %124 = vmatprep.subr.mxu0 0.0
    %125 = vmatpush2.msra.mxu0 0.0
    %126 = vmatprep.subr.mxu0 0.0
    %127 = vmatpush2.msra.mxu0 0.0
    %128 = vmatprep.subr.mxu0 0.0
    %129 = vmatpush2.msra.mxu0 0.0
    %130 = vmatprep.subr.mxu0 0.0
    %131 = vmatpush2.msra.mxu0 0.0
    %132 = vmatprep.subr.mxu0 0.0
    %133 = vmatpush2.msra.mxu0 0.0
    %134 = vmatprep.subr.mxu0 0.0
    %135 = vmatpush2.msra.mxu0 0.0
    %136 = vmatprep.subr.mxu0 0.0
    %137 = vmatpush2.msra.mxu0 0.0
    %138 = vmatprep.subr.mxu0 0.0
    %139 = vmatpush2.msra.mxu0 0.0
    %140 = vmatprep.subr.mxu0 0.0
    %141 = vmatpush2.msra.mxu0 0.0
    %142 = vmatprep.subr.mxu0 0.0
    %143 = vmatpush2.msra.mxu0 0.0
    %144 = vmatprep.subr.mxu0 0.0
    %145 = vmatpush2.msra.mxu0 0.0
    %146 = vmatprep.mubr.f32.mxu0 0.0
    %147 = vmatmul.mubr.f32.gmra.mxu0 %v77
    %v148 = vpop.f32.mrf.mxu0
    %v149 = vadd.f32 %v73, %v148
    %v150 = vpop.f32.mrf.mxu0
    %151 = vmatprep.mubr.f32.mxu0 0.0
    %152 = vmatmul.mubr.f32.gmra.mxu0 %v80
    %v153 = vpop.f32.mrf.mxu0
    %v154 = vadd.f32 %v73, %v153
    %v155 = vpop.f32.mrf.mxu0
    %156 = vdwg.mxu0
    %v157 = vld [vmem:[#allocation7] sm:$0xff]
    %v158 = vld [vmem:[#allocation7 + $0x8] sm:$0xff]
    %v159 = vld [vmem:[#allocation7 + $0x10] sm:$0xff]
    %v160 = vld [vmem:[#allocation7 + $0x18] sm:$0xff]
    %v161 = vmul.f32 %v149, 0.35355338
    %v162 = vmul.f32 %v154, 0.35355338
    %164 = vrot.lane.b32.xlu0 %v149, 96
    %v165 = vpop.permute.xlu0 %164
    %vm166 = vcmask 64512
    %v168 = vsel %vm166, %v161, 0
    %v170 = vsel %vm166, %v165, 0
    %172 = vmatprep.subr.mxu0 0.0
    %173 = vmatpush1.xpose.msra.mxu0 0.0
    %174 = vmatprep.subr.mxu0 0.0
    %175 = vmatpush1.xpose.msra.mxu0 0.0
    %176 = vmatprep.subr.mxu0 0.0
    %177 = vmatpush1.xpose.msra.mxu0 0.0
    %178 = vmatprep.subr.mxu0 0.0
    %179 = vmatpush1.xpose.msra.mxu0 0.0
    %180 = vmatprep.subr.mxu0 0.0
    %181 = vmatpush1.xpose.msra.mxu0 0.0
    %182 = vmatprep.subr.mxu0 0.0
    %183 = vmatpush1.xpose.msra.mxu0 0.0
    %184 = vmatprep.subr.mxu0 0.0
    %185 = vmatpush1.xpose.msra.mxu0 0.0
    %186 = vmatprep.subr.mxu0 0.0
    %187 = vmatpush1.xpose.msra.mxu0 0.0
    %188 = vmatprep.subr.mxu0 0.0
    %189 = vmatpush1.xpose.msra.mxu0 0.0
    %190 = vmatprep.subr.mxu0 0.0
    %191 = vmatpush1.xpose.msra.mxu0 0.0
    %192 = vmatprep.subr.mxu0 0.0
    %193 = vmatpush1.xpose.msra.mxu0 0.0
    %194 = vmatprep.subr.mxu0 0.0
    %195 = vmatpush1.xpose.msra.mxu0 0.0
    %196 = vmatprep.subr.mxu0 0.0
    %197 = vmatpush1.xpose.msra.mxu0 0.0
    %198 = vmatprep.subr.mxu0 0.0
    %199 = vmatpush1.xpose.msra.mxu0 0.0
    %200 = vmatprep.subr.mxu0 0.0
    %201 = vmatpush1.xpose.msra.mxu0 0.0
    %202 = vmatprep.subr.mxu0 0.0
    %203 = vmatpush1.xpose.msra.mxu0 %v170
    %204 = vmatprep.subr.mxu0 0.0
    %205 = vmatpush2.xpose.msra.mxu0 0.0
    %206 = vmatprep.subr.mxu0 0.0
    %207 = vmatpush2.xpose.msra.mxu0 0.0
    %208 = vmatprep.subr.mxu0 0.0
    %209 = vmatpush2.xpose.msra.mxu0 0.0
    %210 = vmatprep.subr.mxu0 0.0
    %211 = vmatpush2.xpose.msra.mxu0 0.0
    %212 = vmatprep.subr.mxu0 0.0
    %213 = vmatpush2.xpose.msra.mxu0 0.0
    %214 = vmatprep.subr.mxu0 0.0
    %215 = vmatpush2.xpose.msra.mxu0 0.0
    %216 = vmatprep.subr.mxu0 0.0
    %217 = vmatpush2.xpose.msra.mxu0 0.0
    %218 = vmatprep.subr.mxu0 0.0
    %219 = vmatpush2.xpose.msra.mxu0 0.0
    %220 = vmatprep.subr.mxu0 0.0
    %221 = vmatpush2.xpose.msra.mxu0 0.0
    %222 = vmatprep.subr.mxu0 0.0
    %223 = vmatpush2.xpose.msra.mxu0 0.0
    %224 = vmatprep.subr.mxu0 0.0
    %225 = vmatpush2.xpose.msra.mxu0 0.0
    %226 = vmatprep.subr.mxu0 0.0
    %227 = vmatpush2.xpose.msra.mxu0 0.0
    %228 = vmatprep.subr.mxu0 0.0
    %229 = vmatpush2.xpose.msra.mxu0 0.0
    %230 = vmatprep.subr.mxu0 0.0
    %231 = vmatpush2.xpose.msra.mxu0 0.0
    %232 = vmatprep.subr.mxu0 0.0
    %233 = vmatpush2.xpose.msra.mxu0 0.0
    %234 = vmatprep.subr.mxu0 0.0
    %235 = vmatpush2.xpose.msra.mxu0 0.0
    %236 = vmatprep.mubr.f32.mxu0 0.0
    %237 = vmatmul.mubr.f32.gmra.mxu0 %v168
    %v238 = vpop.f32.mrf.mxu0
    %v239 = vadd.f32 0.0, %v238
    %v240 = vpop.f32.mrf.mxu0
    %241 = vdwg.mxu0
    %243 = vrot.lane.b32.xlu0 %v154, 96
    %v244 = vpop.permute.xlu0 %243
    %v246 = vsel %vm166, %v162, 0
    %v248 = vsel %vm166, %v244, 0
    %250 = vmatprep.subr.mxu0 0.0
    %251 = vmatpush1.xpose.msra.mxu0 0.0
    %252 = vmatprep.subr.mxu0 0.0
    %253 = vmatpush1.xpose.msra.mxu0 0.0
    %254 = vmatprep.subr.mxu0 0.0
    %255 = vmatpush1.xpose.msra.mxu0 0.0
    %256 = vmatprep.subr.mxu0 0.0
    %257 = vmatpush1.xpose.msra.mxu0 0.0
    %258 = vmatprep.subr.mxu0 0.0
    %259 = vmatpush1.xpose.msra.mxu0 0.0
    %260 = vmatprep.subr.mxu0 0.0
    %261 = vmatpush1.xpose.msra.mxu0 0.0
    %262 = vmatprep.subr.mxu0 0.0
    %263 = vmatpush1.xpose.msra.mxu0 0.0
    %264 = vmatprep.subr.mxu0 0.0
    %265 = vmatpush1.xpose.msra.mxu0 0.0
    %266 = vmatprep.subr.mxu0 0.0
    %267 = vmatpush1.xpose.msra.mxu0 0.0
    %268 = vmatprep.subr.mxu0 0.0
    %269 = vmatpush1.xpose.msra.mxu0 0.0
    %270 = vmatprep.subr.mxu0 0.0
    %271 = vmatpush1.xpose.msra.mxu0 0.0
    %272 = vmatprep.subr.mxu0 0.0
    %273 = vmatpush1.xpose.msra.mxu0 0.0
    %274 = vmatprep.subr.mxu0 0.0
    %275 = vmatpush1.xpose.msra.mxu0 0.0
    %276 = vmatprep.subr.mxu0 0.0
    %277 = vmatpush1.xpose.msra.mxu0 0.0
    %278 = vmatprep.subr.mxu0 0.0
    %279 = vmatpush1.xpose.msra.mxu0 0.0
    %280 = vmatprep.subr.mxu0 0.0
    %281 = vmatpush1.xpose.msra.mxu0 %v248
    %282 = vmatprep.subr.mxu0 0.0
    %283 = vmatpush2.xpose.msra.mxu0 0.0
    %284 = vmatprep.subr.mxu0 0.0
    %285 = vmatpush2.xpose.msra.mxu0 0.0
    %286 = vmatprep.subr.mxu0 0.0
    %287 = vmatpush2.xpose.msra.mxu0 0.0
    %288 = vmatprep.subr.mxu0 0.0
    %289 = vmatpush2.xpose.msra.mxu0 0.0
    %290 = vmatprep.subr.mxu0 0.0
    %291 = vmatpush2.xpose.msra.mxu0 0.0
    %292 = vmatprep.subr.mxu0 0.0
    %293 = vmatpush2.xpose.msra.mxu0 0.0
    %294 = vmatprep.subr.mxu0 0.0
    %295 = vmatpush2.xpose.msra.mxu0 0.0
    %296 = vmatprep.subr.mxu0 0.0
    %297 = vmatpush2.xpose.msra.mxu0 0.0
    %298 = vmatprep.subr.mxu0 0.0
    %299 = vmatpush2.xpose.msra.mxu0 0.0
    %300 = vmatprep.subr.mxu0 0.0
    %301 = vmatpush2.xpose.msra.mxu0 0.0
    %302 = vmatprep.subr.mxu0 0.0
    %303 = vmatpush2.xpose.msra.mxu0 0.0
    %304 = vmatprep.subr.mxu0 0.0
    %305 = vmatpush2.xpose.msra.mxu0 0.0
    %306 = vmatprep.subr.mxu0 0.0
    %307 = vmatpush2.xpose.msra.mxu0 0.0
    %308 = vmatprep.subr.mxu0 0.0
    %309 = vmatpush2.xpose.msra.mxu0 0.0
    %310 = vmatprep.subr.mxu0 0.0
    %311 = vmatpush2.xpose.msra.mxu0 0.0
    %312 = vmatprep.subr.mxu0 0.0
    %313 = vmatpush2.xpose.msra.mxu0 0.0
    %314 = vmatprep.mubr.f32.mxu0 0.0
    %315 = vmatmul.mubr.f32.gmra.mxu0 %v246
    %v316 = vpop.f32.mrf.mxu0
    %v317 = vadd.f32 0.0, %v316
    %v318 = vpop.f32.mrf.mxu0
    %319 = vdwg.mxu0
    %v320 = vsel %vm166, %v239, -inf
    %321 = vmax.xlane.f32.xlu0 %v320
    %v322 = vpop.xlane.xlu0 %321
    %v323 = vsel %vm166, %v317, -inf
    %324 = vmax.xlane.f32.xlu0 %v323
    %v325 = vpop.xlane.xlu0 %324
    %v326 = vsub.f32 %v239, %v322
    %v327 = vsub.f32 %v317, %v325
    %v328 = vmul.f32 %v326, 1.442695
    %v329 = vpow.pop %v328
    %v330 = vmul.f32 %v327, 1.442695
    %v331 = vpow.pop %v330
    %v332 = vsel %vm166, %v329, 0.0
    %333 = vadd.xlane.f32.xlu0 %v332
    %v334 = vpop.xlane.xlu0 %333
    %v335 = vsel %vm166, %v331, 0.0
    %336 = vadd.xlane.f32.xlu0 %v335
    %v337 = vpop.xlane.xlu0 %336
    %v338 = vrcp.pop %v334
    %v339 = vmul.f32 %v329, %v338
    %v340 = vrcp.pop %v337
    %v341 = vmul.f32 %v331, %v340
    %342 = vrot.lane.b32.xlu0 %v149, 64
    %v343 = vpop.permute.xlu0 %342
    %v346 = vsel %vm166, %v339, 0
    %348 = vmatprep.subr.mxu0 0.0
    %349 = vmatpush1.msra.mxu0 0.0
    %350 = vmatprep.subr.mxu0 0.0
    %351 = vmatpush1.msra.mxu0 0.0
    %352 = vmatprep.subr.mxu0 0.0
    %353 = vmatpush1.msra.mxu0 0.0
    %354 = vmatprep.subr.mxu0 0.0
    %355 = vmatpush1.msra.mxu0 0.0
    %356 = vmatprep.subr.mxu0 0.0
    %357 = vmatpush1.msra.mxu0 0.0
    %358 = vmatprep.subr.mxu0 0.0
    %359 = vmatpush1.msra.mxu0 0.0
    %360 = vmatprep.subr.mxu0 0.0
    %361 = vmatpush1.msra.mxu0 0.0
    %362 = vmatprep.subr.mxu0 0.0
    %363 = vmatpush1.msra.mxu0 0.0
    %364 = vmatprep.subr.mxu0 0.0
    %365 = vmatpush1.msra.mxu0 0.0
    %366 = vmatprep.subr.mxu0 0.0
    %367 = vmatpush1.msra.mxu0 0.0
    %368 = vmatprep.subr.mxu0 0.0
    %369 = vmatpush1.msra.mxu0 0.0
    %370 = vmatprep.subr.mxu0 0.0
    %371 = vmatpush1.msra.mxu0 0.0
    %372 = vmatprep.subr.mxu0 0.0
    %373 = vmatpush1.msra.mxu0 0.0
    %374 = vmatprep.subr.mxu0 0.0
    %375 = vmatpush1.msra.mxu0 0.0
    %376 = vmatprep.subr.mxu0 0.0
    %377 = vmatpush1.msra.mxu0 0.0
    %378 = vmatprep.subr.mxu0 0.0
    %379 = vmatpush1.msra.mxu0 %v343
    %380 = vmatprep.subr.mxu0 0.0
    %381 = vmatpush2.msra.mxu0 0.0
    %382 = vmatprep.subr.mxu0 0.0
    %383 = vmatpush2.msra.mxu0 0.0
    %384 = vmatprep.subr.mxu0 0.0
    %385 = vmatpush2.msra.mxu0 0.0
    %386 = vmatprep.subr.mxu0 0.0
    %387 = vmatpush2.msra.mxu0 0.0
    %388 = vmatprep.subr.mxu0 0.0
    %389 = vmatpush2.msra.mxu0 0.0
    %390 = vmatprep.subr.mxu0 0.0
    %391 = vmatpush2.msra.mxu0 0.0
    %392 = vmatprep.subr.mxu0 0.0
    %393 = vmatpush2.msra.mxu0 0.0
    %394 = vmatprep.subr.mxu0 0.0
    %395 = vmatpush2.msra.mxu0 0.0
    %396 = vmatprep.subr.mxu0 0.0
    %397 = vmatpush2.msra.mxu0 0.0
    %398 = vmatprep.subr.mxu0 0.0
    %399 = vmatpush2.msra.mxu0 0.0
    %400 = vmatprep.subr.mxu0 0.0
    %401 = vmatpush2.msra.mxu0 0.0
    %402 = vmatprep.subr.mxu0 0.0
    %403 = vmatpush2.msra.mxu0 0.0
    %404 = vmatprep.subr.mxu0 0.0
    %405 = vmatpush2.msra.mxu0 0.0
    %406 = vmatprep.subr.mxu0 0.0
    %407 = vmatpush2.msra.mxu0 0.0
    %408 = vmatprep.subr.mxu0 0.0
    %409 = vmatpush2.msra.mxu0 0.0
    %410 = vmatprep.subr.mxu0 0.0
    %411 = vmatpush2.msra.mxu0 0.0
    %412 = vmatprep.mubr.f32.mxu0 0.0
    %413 = vmatmul.mubr.f32.gmra.mxu0 %v346
    %v414 = vpop.f32.mrf.mxu0
    %v415 = vadd.f32 0.0, %v414
    %v416 = vpop.f32.mrf.mxu0
    %417 = vdwg.mxu0
    %418 = vrot.lane.b32.xlu0 %v154, 64
    %v419 = vpop.permute.xlu0 %418
    %v422 = vsel %vm166, %v341, 0
    %424 = vmatprep.subr.mxu0 0.0
    %425 = vmatpush1.msra.mxu0 0.0
    %426 = vmatprep.subr.mxu0 0.0
    %427 = vmatpush1.msra.mxu0 0.0
    %428 = vmatprep.subr.mxu0 0.0
    %429 = vmatpush1.msra.mxu0 0.0
    %430 = vmatprep.subr.mxu0 0.0
    %431 = vmatpush1.msra.mxu0 0.0
    %432 = vmatprep.subr.mxu0 0.0
    %433 = vmatpush1.msra.mxu0 0.0
    %434 = vmatprep.subr.mxu0 0.0
    %435 = vmatpush1.msra.mxu0 0.0
    %436 = vmatprep.subr.mxu0 0.0
    %437 = vmatpush1.msra.mxu0 0.0
    %438 = vmatprep.subr.mxu0 0.0
    %439 = vmatpush1.msra.mxu0 0.0
    %440 = vmatprep.subr.mxu0 0.0
    %441 = vmatpush1.msra.mxu0 0.0
    %442 = vmatprep.subr.mxu0 0.0
    %443 = vmatpush1.msra.mxu0 0.0
    %444 = vmatprep.subr.mxu0 0.0
    %445 = vmatpush1.msra.mxu0 0.0
    %446 = vmatprep.subr.mxu0 0.0
    %447 = vmatpush1.msra.mxu0 0.0
    %448 = vmatprep.subr.mxu0 0.0
    %449 = vmatpush1.msra.mxu0 0.0
    %450 = vmatprep.subr.mxu0 0.0
    %451 = vmatpush1.msra.mxu0 0.0
    %452 = vmatprep.subr.mxu0 0.0
    %453 = vmatpush1.msra.mxu0 0.0
    %454 = vmatprep.subr.mxu0 0.0
    %455 = vmatpush1.msra.mxu0 %v419
    %456 = vmatprep.subr.mxu0 0.0
    %457 = vmatpush2.msra.mxu0 0.0
    %458 = vmatprep.subr.mxu0 0.0
    %459 = vmatpush2.msra.mxu0 0.0
    %460 = vmatprep.subr.mxu0 0.0
    %461 = vmatpush2.msra.mxu0 0.0
    %462 = vmatprep.subr.mxu0 0.0
    %463 = vmatpush2.msra.mxu0 0.0
    %464 = vmatprep.subr.mxu0 0.0
    %465 = vmatpush2.msra.mxu0 0.0
    %466 = vmatprep.subr.mxu0 0.0
    %467 = vmatpush2.msra.mxu0 0.0
    %468 = vmatprep.subr.mxu0 0.0
    %469 = vmatpush2.msra.mxu0 0.0
    %470 = vmatprep.subr.mxu0 0.0
    %471 = vmatpush2.msra.mxu0 0.0
    %472 = vmatprep.subr.mxu0 0.0
    %473 = vmatpush2.msra.mxu0 0.0
    %474 = vmatprep.subr.mxu0 0.0
    %475 = vmatpush2.msra.mxu0 0.0
    %476 = vmatprep.subr.mxu0 0.0
    %477 = vmatpush2.msra.mxu0 0.0
    %478 = vmatprep.subr.mxu0 0.0
    %479 = vmatpush2.msra.mxu0 0.0
    %480 = vmatprep.subr.mxu0 0.0
    %481 = vmatpush2.msra.mxu0 0.0
    %482 = vmatprep.subr.mxu0 0.0
    %483 = vmatpush2.msra.mxu0 0.0
    %484 = vmatprep.subr.mxu0 0.0
    %485 = vmatpush2.msra.mxu0 0.0
    %486 = vmatprep.subr.mxu0 0.0
    %487 = vmatpush2.msra.mxu0 0.0
    %488 = vmatprep.mubr.f32.mxu0 0.0
    %489 = vmatmul.mubr.f32.gmra.mxu0 %v422
    %v490 = vpop.f32.mrf.mxu0
    %v491 = vadd.f32 0.0, %v490
    %v492 = vpop.f32.mrf.mxu0
    %493 = vdwg.mxu0
    %494 = vrot.lane.b32.xlu0 %v161, 120
    %v495 = vpop.permute.xlu0 %494
    %496 = vrot.lane.b32.xlu0 %v149, 88
    %v497 = vpop.permute.xlu0 %496
    %v498 = vsel %vm166, %v495, 0
    %v500 = vsel %vm166, %v497, 0
    %502 = vmatprep.subr.mxu0 0.0
    %503 = vmatpush1.xpose.msra.mxu0 0.0
    %504 = vmatprep.subr.mxu0 0.0
    %505 = vmatpush1.xpose.msra.mxu0 0.0
    %506 = vmatprep.subr.mxu0 0.0
    %507 = vmatpush1.xpose.msra.mxu0 0.0
    %508 = vmatprep.subr.mxu0 0.0
    %509 = vmatpush1.xpose.msra.mxu0 0.0
    %510 = vmatprep.subr.mxu0 0.0
    %511 = vmatpush1.xpose.msra.mxu0 0.0
    %512 = vmatprep.subr.mxu0 0.0
    %513 = vmatpush1.xpose.msra.mxu0 0.0
    %514 = vmatprep.subr.mxu0 0.0
    %515 = vmatpush1.xpose.msra.mxu0 0.0
    %516 = vmatprep.subr.mxu0 0.0
    %517 = vmatpush1.xpose.msra.mxu0 0.0
    %518 = vmatprep.subr.mxu0 0.0
    %519 = vmatpush1.xpose.msra.mxu0 0.0
    %520 = vmatprep.subr.mxu0 0.0
    %521 = vmatpush1.xpose.msra.mxu0 0.0
    %522 = vmatprep.subr.mxu0 0.0
    %523 = vmatpush1.xpose.msra.mxu0 0.0
    %524 = vmatprep.subr.mxu0 0.0
    %525 = vmatpush1.xpose.msra.mxu0 0.0
    %526 = vmatprep.subr.mxu0 0.0
    %527 = vmatpush1.xpose.msra.mxu0 0.0
    %528 = vmatprep.subr.mxu0 0.0
    %529 = vmatpush1.xpose.msra.mxu0 0.0
    %530 = vmatprep.subr.mxu0 0.0
    %531 = vmatpush1.xpose.msra.mxu0 0.0
    %532 = vmatprep.subr.mxu0 0.0
    %533 = vmatpush1.xpose.msra.mxu0 %v500
    %534 = vmatprep.subr.mxu0 0.0
    %535 = vmatpush2.xpose.msra.mxu0 0.0
    %536 = vmatprep.subr.mxu0 0.0
    %537 = vmatpush2.xpose.msra.mxu0 0.0
    %538 = vmatprep.subr.mxu0 0.0
    %539 = vmatpush2.xpose.msra.mxu0 0.0
    %540 = vmatprep.subr.mxu0 0.0
    %541 = vmatpush2.xpose.msra.mxu0 0.0
    %542 = vmatprep.subr.mxu0 0.0
    %543 = vmatpush2.xpose.msra.mxu0 0.0
    %544 = vmatprep.subr.mxu0 0.0
    %545 = vmatpush2.xpose.msra.mxu0 0.0
    %546 = vmatprep.subr.mxu0 0.0
    %547 = vmatpush2.xpose.msra.mxu0 0.0
    %548 = vmatprep.subr.mxu0 0.0
    %549 = vmatpush2.xpose.msra.mxu0 0.0
    %550 = vmatprep.subr.mxu0 0.0
    %551 = vmatpush2.xpose.msra.mxu0 0.0
    %552 = vmatprep.subr.mxu0 0.0
    %553 = vmatpush2.xpose.msra.mxu0 0.0
    %554 = vmatprep.subr.mxu0 0.0
    %555 = vmatpush2.xpose.msra.mxu0 0.0
    %556 = vmatprep.subr.mxu0 0.0
    %557 = vmatpush2.xpose.msra.mxu0 0.0
    %558 = vmatprep.subr.mxu0 0.0
    %559 = vmatpush2.xpose.msra.mxu0 0.0
    %560 = vmatprep.subr.mxu0 0.0
    %561 = vmatpush2.xpose.msra.mxu0 0.0
    %562 = vmatprep.subr.mxu0 0.0
    %563 = vmatpush2.xpose.msra.mxu0 0.0
    %564 = vmatprep.subr.mxu0 0.0
    %565 = vmatpush2.xpose.msra.mxu0 0.0
    %566 = vmatprep.mubr.f32.mxu0 0.0
    %567 = vmatmul.mubr.f32.gmra.mxu0 %v498
    %v568 = vpop.f32.mrf.mxu0
    %v569 = vadd.f32 0.0, %v568
    %v570 = vpop.f32.mrf.mxu0
    %571 = vdwg.mxu0
    %572 = vrot.lane.b32.xlu0 %v162, 120
    %v573 = vpop.permute.xlu0 %572
    %574 = vrot.lane.b32.xlu0 %v154, 88
    %v575 = vpop.permute.xlu0 %574
    %v576 = vsel %vm166, %v573, 0
    %v578 = vsel %vm166, %v575, 0
    %580 = vmatprep.subr.mxu0 0.0
    %581 = vmatpush1.xpose.msra.mxu0 0.0
    %582 = vmatprep.subr.mxu0 0.0
    %583 = vmatpush1.xpose.msra.mxu0 0.0
    %584 = vmatprep.subr.mxu0 0.0
    %585 = vmatpush1.xpose.msra.mxu0 0.0
    %586 = vmatprep.subr.mxu0 0.0
    %587 = vmatpush1.xpose.msra.mxu0 0.0
    %588 = vmatprep.subr.mxu0 0.0
    %589 = vmatpush1.xpose.msra.mxu0 0.0
    %590 = vmatprep.subr.mxu0 0.0
    %591 = vmatpush1.xpose.msra.mxu0 0.0
    %592 = vmatprep.subr.mxu0 0.0
    %593 = vmatpush1.xpose.msra.mxu0 0.0
    %594 = vmatprep.subr.mxu0 0.0
    %595 = vmatpush1.xpose.msra.mxu0 0.0
    %596 = vmatprep.subr.mxu0 0.0
    %597 = vmatpush1.xpose.msra.mxu0 0.0
    %598 = vmatprep.subr.mxu0 0.0
    %599 = vmatpush1.xpose.msra.mxu0 0.0
    %600 = vmatprep.subr.mxu0 0.0
    %601 = vmatpush1.xpose.msra.mxu0 0.0
    %602 = vmatprep.subr.mxu0 0.0
    %603 = vmatpush1.xpose.msra.mxu0 0.0
    %604 = vmatprep.subr.mxu0 0.0
    %605 = vmatpush1.xpose.msra.mxu0 0.0
    %606 = vmatprep.subr.mxu0 0.0
    %607 = vmatpush1.xpose.msra.mxu0 0.0
    %608 = vmatprep.subr.mxu0 0.0
    %609 = vmatpush1.xpose.msra.mxu0 0.0
    %610 = vmatprep.subr.mxu0 0.0
    %611 = vmatpush1.xpose.msra.mxu0 %v578
    %612 = vmatprep.subr.mxu0 0.0
    %613 = vmatpush2.xpose.msra.mxu0 0.0
    %614 = vmatprep.subr.mxu0 0.0
    %615 = vmatpush2.xpose.msra.mxu0 0.0
    %616 = vmatprep.subr.mxu0 0.0
    %617 = vmatpush2.xpose.msra.mxu0 0.0
    %618 = vmatprep.subr.mxu0 0.0
    %619 = vmatpush2.xpose.msra.mxu0 0.0
    %620 = vmatprep.subr.mxu0 0.0
    %621 = vmatpush2.xpose.msra.mxu0 0.0
    %622 = vmatprep.subr.mxu0 0.0
    %623 = vmatpush2.xpose.msra.mxu0 0.0
    %624 = vmatprep.subr.mxu0 0.0
    %625 = vmatpush2.xpose.msra.mxu0 0.0
    %626 = vmatprep.subr.mxu0 0.0
    %627 = vmatpush2.xpose.msra.mxu0 0.0
    %628 = vmatprep.subr.mxu0 0.0
    %629 = vmatpush2.xpose.msra.mxu0 0.0
    %630 = vmatprep.subr.mxu0 0.0
    %631 = vmatpush2.xpose.msra.mxu0 0.0
    %632 = vmatprep.subr.mxu0 0.0
    %633 = vmatpush2.xpose.msra.mxu0 0.0
    %634 = vmatprep.subr.mxu0 0.0
    %635 = vmatpush2.xpose.msra.mxu0 0.0
    %636 = vmatprep.subr.mxu0 0.0
    %637 = vmatpush2.xpose.msra.mxu0 0.0
    %638 = vmatprep.subr.mxu0 0.0
    %639 = vmatpush2.xpose.msra.mxu0 0.0
    %640 = vmatprep.subr.mxu0 0.0
    %641 = vmatpush2.xpose.msra.mxu0 0.0
    %642 = vmatprep.subr.mxu0 0.0
    %643 = vmatpush2.xpose.msra.mxu0 0.0
    %644 = vmatprep.mubr.f32.mxu0 0.0
    %645 = vmatmul.mubr.f32.gmra.mxu0 %v576
    %v646 = vpop.f32.mrf.mxu0
    %v647 = vadd.f32 0.0, %v646
    %v648 = vpop.f32.mrf.mxu0
    %649 = vdwg.mxu0
    %v650 = vsel %vm166, %v569, -inf
    %651 = vmax.xlane.f32.xlu0 %v650
    %v652 = vpop.xlane.xlu0 %651
    %v653 = vsel %vm166, %v647, -inf
    %654 = vmax.xlane.f32.xlu0 %v653
    %v655 = vpop.xlane.xlu0 %654
    %v656 = vsub.f32 %v569, %v652
    %v657 = vsub.f32 %v647, %v655
    %v658 = vmul.f32 %v656, 1.442695
    %v659 = vpow.pop %v658
    %v660 = vmul.f32 %v657, 1.442695
    %v661 = vpow.pop %v660
    %v662 = vsel %vm166, %v659, 0.0
    %663 = vadd.xlane.f32.xlu0 %v662
    %v664 = vpop.xlane.xlu0 %663
    %v665 = vsel %vm166, %v661, 0.0
    %666 = vadd.xlane.f32.xlu0 %v665
    %v667 = vpop.xlane.xlu0 %666
    %v668 = vrcp.pop %v664
    %v669 = vmul.f32 %v659, %v668
    %v670 = vrcp.pop %v667
    %v671 = vmul.f32 %v661, %v670
    %672 = vrot.lane.b32.xlu0 %v149, 56
    %v673 = vpop.permute.xlu0 %672
    %v676 = vsel %vm166, %v669, 0
    %678 = vmatprep.subr.mxu0 0.0
    %679 = vmatpush1.msra.mxu0 0.0
    %680 = vmatprep.subr.mxu0 0.0
    %681 = vmatpush1.msra.mxu0 0.0
    %682 = vmatprep.subr.mxu0 0.0
    %683 = vmatpush1.msra.mxu0 0.0
    %684 = vmatprep.subr.mxu0 0.0
    %685 = vmatpush1.msra.mxu0 0.0
    %686 = vmatprep.subr.mxu0 0.0
    %687 = vmatpush1.msra.mxu0 0.0
    %688 = vmatprep.subr.mxu0 0.0
    %689 = vmatpush1.msra.mxu0 0.0
    %690 = vmatprep.subr.mxu0 0.0
    %691 = vmatpush1.msra.mxu0 0.0
    %692 = vmatprep.subr.mxu0 0.0
    %693 = vmatpush1.msra.mxu0 0.0
    %694 = vmatprep.subr.mxu0 0.0
    %695 = vmatpush1.msra.mxu0 0.0
    %696 = vmatprep.subr.mxu0 0.0
    %697 = vmatpush1.msra.mxu0 0.0
    %698 = vmatprep.subr.mxu0 0.0
    %699 = vmatpush1.msra.mxu0 0.0
    %700 = vmatprep.subr.mxu0 0.0
    %701 = vmatpush1.msra.mxu0 0.0
    %702 = vmatprep.subr.mxu0 0.0
    %703 = vmatpush1.msra.mxu0 0.0
    %704 = vmatprep.subr.mxu0 0.0
    %705 = vmatpush1.msra.mxu0 0.0
    %706 = vmatprep.subr.mxu0 0.0
    %707 = vmatpush1.msra.mxu0 0.0
    %708 = vmatprep.subr.mxu0 0.0
    %709 = vmatpush1.msra.mxu0 %v673
    %710 = vmatprep.subr.mxu0 0.0
    %711 = vmatpush2.msra.mxu0 0.0
    %712 = vmatprep.subr.mxu0 0.0
    %713 = vmatpush2.msra.mxu0 0.0
    %714 = vmatprep.subr.mxu0 0.0
    %715 = vmatpush2.msra.mxu0 0.0
    %716 = vmatprep.subr.mxu0 0.0
    %717 = vmatpush2.msra.mxu0 0.0
    %718 = vmatprep.subr.mxu0 0.0
    %719 = vmatpush2.msra.mxu0 0.0
    %720 = vmatprep.subr.mxu0 0.0
    %721 = vmatpush2.msra.mxu0 0.0
    %722 = vmatprep.subr.mxu0 0.0
    %723 = vmatpush2.msra.mxu0 0.0
    %724 = vmatprep.subr.mxu0 0.0
    %725 = vmatpush2.msra.mxu0 0.0
    %726 = vmatprep.subr.mxu0 0.0
    %727 = vmatpush2.msra.mxu0 0.0
    %728 = vmatprep.subr.mxu0 0.0
    %729 = vmatpush2.msra.mxu0 0.0
    %730 = vmatprep.subr.mxu0 0.0
    %731 = vmatpush2.msra.mxu0 0.0
    %732 = vmatprep.subr.mxu0 0.0
    %733 = vmatpush2.msra.mxu0 0.0
    %734 = vmatprep.subr.mxu0 0.0
    %735 = vmatpush2.msra.mxu0 0.0
    %736 = vmatprep.subr.mxu0 0.0
    %737 = vmatpush2.msra.mxu0 0.0
    %738 = vmatprep.subr.mxu0 0.0
    %739 = vmatpush2.msra.mxu0 0.0
    %740 = vmatprep.subr.mxu0 0.0
    %741 = vmatpush2.msra.mxu0 0.0
    %742 = vmatprep.mubr.f32.mxu0 0.0
    %743 = vmatmul.mubr.f32.gmra.mxu0 %v676
    %v744 = vpop.f32.mrf.mxu0
    %v745 = vadd.f32 0.0, %v744
    %v746 = vpop.f32.mrf.mxu0
    %747 = vdwg.mxu0
    %748 = vrot.lane.b32.xlu0 %v154, 56
    %v749 = vpop.permute.xlu0 %748
    %v752 = vsel %vm166, %v671, 0
    %754 = vmatprep.subr.mxu0 0.0
    %755 = vmatpush1.msra.mxu0 0.0
    %756 = vmatprep.subr.mxu0 0.0
    %757 = vmatpush1.msra.mxu0 0.0
    %758 = vmatprep.subr.mxu0 0.0
    %759 = vmatpush1.msra.mxu0 0.0
    %760 = vmatprep.subr.mxu0 0.0
    %761 = vmatpush1.msra.mxu0 0.0
    %762 = vmatprep.subr.mxu0 0.0
    %763 = vmatpush1.msra.mxu0 0.0
    %764 = vmatprep.subr.mxu0 0.0
    %765 = vmatpush1.msra.mxu0 0.0
    %766 = vmatprep.subr.mxu0 0.0
    %767 = vmatpush1.msra.mxu0 0.0
    %768 = vmatprep.subr.mxu0 0.0
    %769 = vmatpush1.msra.mxu0 0.0
    %770 = vmatprep.subr.mxu0 0.0
    %771 = vmatpush1.msra.mxu0 0.0
    %772 = vmatprep.subr.mxu0 0.0
    %773 = vmatpush1.msra.mxu0 0.0
    %774 = vmatprep.subr.mxu0 0.0
    %775 = vmatpush1.msra.mxu0 0.0
    %776 = vmatprep.subr.mxu0 0.0
    %777 = vmatpush1.msra.mxu0 0.0
    %778 = vmatprep.subr.mxu0 0.0
    %779 = vmatpush1.msra.mxu0 0.0
    %780 = vmatprep.subr.mxu0 0.0
    %781 = vmatpush1.msra.mxu0 0.0
    %782 = vmatprep.subr.mxu0 0.0
    %783 = vmatpush1.msra.mxu0 0.0
    %784 = vmatprep.subr.mxu0 0.0
    %785 = vmatpush1.msra.mxu0 %v749
    %786 = vmatprep.subr.mxu0 0.0
    %787 = vmatpush2.msra.mxu0 0.0
    %788 = vmatprep.subr.mxu0 0.0
    %789 = vmatpush2.msra.mxu0 0.0
    %790 = vmatprep.subr.mxu0 0.0
    %791 = vmatpush2.msra.mxu0 0.0
    %792 = vmatprep.subr.mxu0 0.0
    %793 = vmatpush2.msra.mxu0 0.0
    %794 = vmatprep.subr.mxu0 0.0
    %795 = vmatpush2.msra.mxu0 0.0
    %796 = vmatprep.subr.mxu0 0.0
    %797 = vmatpush2.msra.mxu0 0.0
    %798 = vmatprep.subr.mxu0 0.0
    %799 = vmatpush2.msra.mxu0 0.0
    %800 = vmatprep.subr.mxu0 0.0
    %801 = vmatpush2.msra.mxu0 0.0
    %802 = vmatprep.subr.mxu0 0.0
    %803 = vmatpush2.msra.mxu0 0.0
    %804 = vmatprep.subr.mxu0 0.0
    %805 = vmatpush2.msra.mxu0 0.0
    %806 = vmatprep.subr.mxu0 0.0
    %807 = vmatpush2.msra.mxu0 0.0
    %808 = vmatprep.subr.mxu0 0.0
    %809 = vmatpush2.msra.mxu0 0.0
    %810 = vmatprep.subr.mxu0 0.0
    %811 = vmatpush2.msra.mxu0 0.0
    %812 = vmatprep.subr.mxu0 0.0
    %813 = vmatpush2.msra.mxu0 0.0
    %814 = vmatprep.subr.mxu0 0.0
    %815 = vmatpush2.msra.mxu0 0.0
    %816 = vmatprep.subr.mxu0 0.0
    %817 = vmatpush2.msra.mxu0 0.0
    %818 = vmatprep.mubr.f32.mxu0 0.0
    %819 = vmatmul.mubr.f32.gmra.mxu0 %v752
    %v820 = vpop.f32.mrf.mxu0
    %v821 = vadd.f32 0.0, %v820
    %v822 = vpop.f32.mrf.mxu0
    %823 = vdwg.mxu0
    %v825 = vsel %vm166, %v745, 0
    %v828 = vsel %vm166, %v821, 0
    %830 = vmatprep.subr.mxu0 0.0
    %831 = vmatpush1.msra.mxu0 0.0
    %832 = vmatprep.subr.mxu0 0.0
    %833 = vmatpush1.msra.mxu0 0.0
    %834 = vmatprep.subr.mxu0 0.0
    %835 = vmatpush1.msra.mxu0 0.0
    %836 = vmatprep.subr.mxu0 0.0
    %837 = vmatpush1.msra.mxu0 0.0
    %838 = vmatprep.subr.mxu0 0.0
    %839 = vmatpush1.msra.mxu0 0.0
    %840 = vmatprep.subr.mxu0 0.0
    %841 = vmatpush1.msra.mxu0 0.0
    %842 = vmatprep.subr.mxu0 0.0
    %843 = vmatpush1.msra.mxu0 0.0
    %844 = vmatprep.subr.mxu0 0.0
    %845 = vmatpush1.msra.mxu0 0.0
    %846 = vmatprep.subr.mxu0 0.0
    %847 = vmatpush1.msra.mxu0 0.0
    %848 = vmatprep.subr.mxu0 0.0
    %849 = vmatpush1.msra.mxu0 0.0
    %850 = vmatprep.subr.mxu0 0.0
    %851 = vmatpush1.msra.mxu0 0.0
    %852 = vmatprep.subr.mxu0 0.0
    %853 = vmatpush1.msra.mxu0 0.0
    %854 = vmatprep.subr.mxu0 0.0
    %855 = vmatpush1.msra.mxu0 0.0
    %856 = vmatprep.subr.mxu0 0.0
    %857 = vmatpush1.msra.mxu0 0.0
    %858 = vmatprep.subr.mxu0 0.0
    %859 = vmatpush1.msra.mxu0 0.0
    %860 = vmatprep.subr.mxu0 0.0
    %861 = vmatpush1.msra.mxu0 %v158
    %862 = vmatprep.subr.mxu0 0.0
    %863 = vmatpush2.msra.mxu0 0.0
    %864 = vmatprep.subr.mxu0 0.0
    %865 = vmatpush2.msra.mxu0 0.0
    %866 = vmatprep.subr.mxu0 0.0
    %867 = vmatpush2.msra.mxu0 0.0
    %868 = vmatprep.subr.mxu0 0.0
    %869 = vmatpush2.msra.mxu0 0.0
    %870 = vmatprep.subr.mxu0 0.0
    %871 = vmatpush2.msra.mxu0 0.0
    %872 = vmatprep.subr.mxu0 0.0
    %873 = vmatpush2.msra.mxu0 0.0
    %874 = vmatprep.subr.mxu0 0.0
    %875 = vmatpush2.msra.mxu0 0.0
    %876 = vmatprep.subr.mxu0 0.0
    %877 = vmatpush2.msra.mxu0 0.0
    %878 = vmatprep.subr.mxu0 0.0
    %879 = vmatpush2.msra.mxu0 0.0
    %880 = vmatprep.subr.mxu0 0.0
    %881 = vmatpush2.msra.mxu0 0.0
    %882 = vmatprep.subr.mxu0 0.0
    %883 = vmatpush2.msra.mxu0 0.0
    %884 = vmatprep.subr.mxu0 0.0
    %885 = vmatpush2.msra.mxu0 0.0
    %886 = vmatprep.subr.mxu0 0.0
    %887 = vmatpush2.msra.mxu0 0.0
    %888 = vmatprep.subr.mxu0 0.0
    %889 = vmatpush2.msra.mxu0 0.0
    %890 = vmatprep.subr.mxu0 0.0
    %891 = vmatpush2.msra.mxu0 0.0
    %892 = vmatprep.subr.mxu0 0.0
    %893 = vmatpush2.msra.mxu0 0.0
    %894 = vmatprep.mubr.f32.mxu0 0.0
    %895 = vmatmul.mubr.f32.gmra.mxu0 %v825
    %v896 = vpop.f32.mrf.mxu0
    %v897 = vadd.f32 0.0, %v896
    %v898 = vpop.f32.mrf.mxu0
    %899 = vmatprep.mubr.f32.mxu0 0.0
    %900 = vmatmul.mubr.f32.gmra.mxu0 %v828
    %v901 = vpop.f32.mrf.mxu0
    %v902 = vadd.f32 0.0, %v901
    %v903 = vpop.f32.mrf.mxu0
    %904 = vdwg.mxu0
    %v906 = vsel %vm166, %v415, 0
    %v909 = vsel %vm166, %v491, 0
    %911 = vmatprep.subr.mxu0 0.0
    %912 = vmatpush1.msra.mxu0 0.0
    %913 = vmatprep.subr.mxu0 0.0
    %914 = vmatpush1.msra.mxu0 0.0
    %915 = vmatprep.subr.mxu0 0.0
    %916 = vmatpush1.msra.mxu0 0.0
    %917 = vmatprep.subr.mxu0 0.0
    %918 = vmatpush1.msra.mxu0 0.0
    %919 = vmatprep.subr.mxu0 0.0
    %920 = vmatpush1.msra.mxu0 0.0
    %921 = vmatprep.subr.mxu0 0.0
    %922 = vmatpush1.msra.mxu0 0.0
    %923 = vmatprep.subr.mxu0 0.0
    %924 = vmatpush1.msra.mxu0 0.0
    %925 = vmatprep.subr.mxu0 0.0
    %926 = vmatpush1.msra.mxu0 0.0
    %927 = vmatprep.subr.mxu0 0.0
    %928 = vmatpush1.msra.mxu0 0.0
    %929 = vmatprep.subr.mxu0 0.0
    %930 = vmatpush1.msra.mxu0 0.0
    %931 = vmatprep.subr.mxu0 0.0
    %932 = vmatpush1.msra.mxu0 0.0
    %933 = vmatprep.subr.mxu0 0.0
    %934 = vmatpush1.msra.mxu0 0.0
    %935 = vmatprep.subr.mxu0 0.0
    %936 = vmatpush1.msra.mxu0 0.0
    %937 = vmatprep.subr.mxu0 0.0
    %938 = vmatpush1.msra.mxu0 0.0
    %939 = vmatprep.subr.mxu0 0.0
    %940 = vmatpush1.msra.mxu0 0.0
    %941 = vmatprep.subr.mxu0 0.0
    %942 = vmatpush1.msra.mxu0 %v157
    %943 = vmatprep.subr.mxu0 0.0
    %944 = vmatpush2.msra.mxu0 0.0
    %945 = vmatprep.subr.mxu0 0.0
    %946 = vmatpush2.msra.mxu0 0.0
    %947 = vmatprep.subr.mxu0 0.0
    %948 = vmatpush2.msra.mxu0 0.0
    %949 = vmatprep.subr.mxu0 0.0
    %950 = vmatpush2.msra.mxu0 0.0
    %951 = vmatprep.subr.mxu0 0.0
    %952 = vmatpush2.msra.mxu0 0.0
    %953 = vmatprep.subr.mxu0 0.0
    %954 = vmatpush2.msra.mxu0 0.0
    %955 = vmatprep.subr.mxu0 0.0
    %956 = vmatpush2.msra.mxu0 0.0
    %957 = vmatprep.subr.mxu0 0.0
    %958 = vmatpush2.msra.mxu0 0.0
    %959 = vmatprep.subr.mxu0 0.0
    %960 = vmatpush2.msra.mxu0 0.0
    %961 = vmatprep.subr.mxu0 0.0
    %962 = vmatpush2.msra.mxu0 0.0
    %963 = vmatprep.subr.mxu0 0.0
    %964 = vmatpush2.msra.mxu0 0.0
    %965 = vmatprep.subr.mxu0 0.0
    %966 = vmatpush2.msra.mxu0 0.0
    %967 = vmatprep.subr.mxu0 0.0
    %968 = vmatpush2.msra.mxu0 0.0
    %969 = vmatprep.subr.mxu0 0.0
    %970 = vmatpush2.msra.mxu0 0.0
    %971 = vmatprep.subr.mxu0 0.0
    %972 = vmatpush2.msra.mxu0 0.0
    %973 = vmatprep.subr.mxu0 0.0
    %974 = vmatpush2.msra.mxu0 0.0
    %975 = vmatprep.mubr.f32.mxu0 0.0
    %976 = vmatmul.mubr.f32.gmra.mxu0 %v906
    %v977 = vpop.f32.mrf.mxu0
    %v978 = vadd.f32 %v897, %v977
    %v979 = vpop.f32.mrf.mxu0
    %980 = vmatprep.mubr.f32.mxu0 0.0
    %981 = vmatmul.mubr.f32.gmra.mxu0 %v909
    %v982 = vpop.f32.mrf.mxu0
    %v983 = vadd.f32 %v902, %v982
    %v984 = vpop.f32.mrf.mxu0
    %985 = vdwg.mxu0
    %986 = vrot.lane.b32.xlu0 %v161, 112
    %v987 = vpop.permute.xlu0 %986
    %988 = vrot.lane.b32.xlu0 %v149, 80
    %v989 = vpop.permute.xlu0 %988
    %v990 = vsel %vm166, %v987, 0
    %v992 = vsel %vm166, %v989, 0
    %994 = vmatprep.subr.mxu0 0.0
    %995 = vmatpush1.xpose.msra.mxu0 0.0
    %996 = vmatprep.subr.mxu0 0.0
    %997 = vmatpush1.xpose.msra.mxu0 0.0
    %998 = vmatprep.subr.mxu0 0.0
    %999 = vmatpush1.xpose.msra.mxu0 0.0
    %1000 = vmatprep.subr.mxu0 0.0
    %1001 = vmatpush1.xpose.msra.mxu0 0.0
    %1002 = vmatprep.subr.mxu0 0.0
    %1003 = vmatpush1.xpose.msra.mxu0 0.0
    %1004 = vmatprep.subr.mxu0 0.0
    %1005 = vmatpush1.xpose.msra.mxu0 0.0
    %1006 = vmatprep.subr.mxu0 0.0
    %1007 = vmatpush1.xpose.msra.mxu0 0.0
    %1008 = vmatprep.subr.mxu0 0.0
    %1009 = vmatpush1.xpose.msra.mxu0 0.0
    %1010 = vmatprep.subr.mxu0 0.0
    %1011 = vmatpush1.xpose.msra.mxu0 0.0
    %1012 = vmatprep.subr.mxu0 0.0
    %1013 = vmatpush1.xpose.msra.mxu0 0.0
    %1014 = vmatprep.subr.mxu0 0.0
    %1015 = vmatpush1.xpose.msra.mxu0 0.0
    %1016 = vmatprep.subr.mxu0 0.0
    %1017 = vmatpush1.xpose.msra.mxu0 0.0
    %1018 = vmatprep.subr.mxu0 0.0
    %1019 = vmatpush1.xpose.msra.mxu0 0.0
    %1020 = vmatprep.subr.mxu0 0.0
    %1021 = vmatpush1.xpose.msra.mxu0 0.0
    %1022 = vmatprep.subr.mxu0 0.0
    %1023 = vmatpush1.xpose.msra.mxu0 0.0
    %1024 = vmatprep.subr.mxu0 0.0
    %1025 = vmatpush1.xpose.msra.mxu0 %v992
    %1026 = vmatprep.subr.mxu0 0.0
    %1027 = vmatpush2.xpose.msra.mxu0 0.0
    %1028 = vmatprep.subr.mxu0 0.0
    %1029 = vmatpush2.xpose.msra.mxu0 0.0
    %1030 = vmatprep.subr.mxu0 0.0
    %1031 = vmatpush2.xpose.msra.mxu0 0.0
    %1032 = vmatprep.subr.mxu0 0.0
    %1033 = vmatpush2.xpose.msra.mxu0 0.0
    %1034 = vmatprep.subr.mxu0 0.0
    %1035 = vmatpush2.xpose.msra.mxu0 0.0
    %1036 = vmatprep.subr.mxu0 0.0
    %1037 = vmatpush2.xpose.msra.mxu0 0.0
    %1038 = vmatprep.subr.mxu0 0.0
    %1039 = vmatpush2.xpose.msra.mxu0 0.0
    %1040 = vmatprep.subr.mxu0 0.0
    %1041 = vmatpush2.xpose.msra.mxu0 0.0
    %1042 = vmatprep.subr.mxu0 0.0
    %1043 = vmatpush2.xpose.msra.mxu0 0.0
    %1044 = vmatprep.subr.mxu0 0.0
    %1045 = vmatpush2.xpose.msra.mxu0 0.0
    %1046 = vmatprep.subr.mxu0 0.0
    %1047 = vmatpush2.xpose.msra.mxu0 0.0
    %1048 = vmatprep.subr.mxu0 0.0
    %1049 = vmatpush2.xpose.msra.mxu0 0.0
    %1050 = vmatprep.subr.mxu0 0.0
    %1051 = vmatpush2.xpose.msra.mxu0 0.0
    %1052 = vmatprep.subr.mxu0 0.0
    %1053 = vmatpush2.xpose.msra.mxu0 0.0
    %1054 = vmatprep.subr.mxu0 0.0
    %1055 = vmatpush2.xpose.msra.mxu0 0.0
    %1056 = vmatprep.subr.mxu0 0.0
    %1057 = vmatpush2.xpose.msra.mxu0 0.0
    %1058 = vmatprep.mubr.f32.mxu0 0.0
    %1059 = vmatmul.mubr.f32.gmra.mxu0 %v990
    %v1060 = vpop.f32.mrf.mxu0
    %v1061 = vadd.f32 0.0, %v1060
    %v1062 = vpop.f32.mrf.mxu0
    %1063 = vdwg.mxu0
    %1064 = vrot.lane.b32.xlu0 %v162, 112
    %v1065 = vpop.permute.xlu0 %1064
    %1066 = vrot.lane.b32.xlu0 %v154, 80
    %v1067 = vpop.permute.xlu0 %1066
    %v1068 = vsel %vm166, %v1065, 0
    %v1070 = vsel %vm166, %v1067, 0
    %1072 = vmatprep.subr.mxu0 0.0
    %1073 = vmatpush1.xpose.msra.mxu0 0.0
    %1074 = vmatprep.subr.mxu0 0.0
    %1075 = vmatpush1.xpose.msra.mxu0 0.0
    %1076 = vmatprep.subr.mxu0 0.0
    %1077 = vmatpush1.xpose.msra.mxu0 0.0
    %1078 = vmatprep.subr.mxu0 0.0
    %1079 = vmatpush1.xpose.msra.mxu0 0.0
    %1080 = vmatprep.subr.mxu0 0.0
    %1081 = vmatpush1.xpose.msra.mxu0 0.0
    %1082 = vmatprep.subr.mxu0 0.0
    %1083 = vmatpush1.xpose.msra.mxu0 0.0
    %1084 = vmatprep.subr.mxu0 0.0
    %1085 = vmatpush1.xpose.msra.mxu0 0.0
    %1086 = vmatprep.subr.mxu0 0.0
    %1087 = vmatpush1.xpose.msra.mxu0 0.0
    %1088 = vmatprep.subr.mxu0 0.0
    %1089 = vmatpush1.xpose.msra.mxu0 0.0
    %1090 = vmatprep.subr.mxu0 0.0
    %1091 = vmatpush1.xpose.msra.mxu0 0.0
    %1092 = vmatprep.subr.mxu0 0.0
    %1093 = vmatpush1.xpose.msra.mxu0 0.0
    %1094 = vmatprep.subr.mxu0 0.0
    %1095 = vmatpush1.xpose.msra.mxu0 0.0
    %1096 = vmatprep.subr.mxu0 0.0
    %1097 = vmatpush1.xpose.msra.mxu0 0.0
    %1098 = vmatprep.subr.mxu0 0.0
    %1099 = vmatpush1.xpose.msra.mxu0 0.0
    %1100 = vmatprep.subr.mxu0 0.0
    %1101 = vmatpush1.xpose.msra.mxu0 0.0
    %1102 = vmatprep.subr.mxu0 0.0
    %1103 = vmatpush1.xpose.msra.mxu0 %v1070
    %1104 = vmatprep.subr.mxu0 0.0
    %1105 = vmatpush2.xpose.msra.mxu0 0.0
    %1106 = vmatprep.subr.mxu0 0.0
    %1107 = vmatpush2.xpose.msra.mxu0 0.0
    %1108 = vmatprep.subr.mxu0 0.0
    %1109 = vmatpush2.xpose.msra.mxu0 0.0
    %1110 = vmatprep.subr.mxu0 0.0
    %1111 = vmatpush2.xpose.msra.mxu0 0.0
    %1112 = vmatprep.subr.mxu0 0.0
    %1113 = vmatpush2.xpose.msra.mxu0 0.0
    %1114 = vmatprep.subr.mxu0 0.0
    %1115 = vmatpush2.xpose.msra.mxu0 0.0
    %1116 = vmatprep.subr.mxu0 0.0
    %1117 = vmatpush2.xpose.msra.mxu0 0.0
    %1118 = vmatprep.subr.mxu0 0.0
    %1119 = vmatpush2.xpose.msra.mxu0 0.0
    %1120 = vmatprep.subr.mxu0 0.0
    %1121 = vmatpush2.xpose.msra.mxu0 0.0
    %1122 = vmatprep.subr.mxu0 0.0
    %1123 = vmatpush2.xpose.msra.mxu0 0.0
    %1124 = vmatprep.subr.mxu0 0.0
    %1125 = vmatpush2.xpose.msra.mxu0 0.0
    %1126 = vmatprep.subr.mxu0 0.0
    %1127 = vmatpush2.xpose.msra.mxu0 0.0
    %1128 = vmatprep.subr.mxu0 0.0
    %1129 = vmatpush2.xpose.msra.mxu0 0.0
    %1130 = vmatprep.subr.mxu0 0.0
    %1131 = vmatpush2.xpose.msra.mxu0 0.0
    %1132 = vmatprep.subr.mxu0 0.0
    %1133 = vmatpush2.xpose.msra.mxu0 0.0
    %1134 = vmatprep.subr.mxu0 0.0
    %1135 = vmatpush2.xpose.msra.mxu0 0.0
    %1136 = vmatprep.mubr.f32.mxu0 0.0
    %1137 = vmatmul.mubr.f32.gmra.mxu0 %v1068
    %v1138 = vpop.f32.mrf.mxu0
    %v1139 = vadd.f32 0.0, %v1138
    %v1140 = vpop.f32.mrf.mxu0
    %1141 = vdwg.mxu0
    %v1142 = vsel %vm166, %v1061, -inf
    %1143 = vmax.xlane.f32.xlu0 %v1142
    %v1144 = vpop.xlane.xlu0 %1143
    %v1145 = vsel %vm166, %v1139, -inf
    %1146 = vmax.xlane.f32.xlu0 %v1145
    %v1147 = vpop.xlane.xlu0 %1146
    %v1148 = vsub.f32 %v1061, %v1144
    %v1149 = vsub.f32 %v1139, %v1147
    %v1150 = vmul.f32 %v1148, 1.442695
    %v1151 = vpow.pop %v1150
    %v1152 = vmul.f32 %v1149, 1.442695
    %v1153 = vpow.pop %v1152
    %v1154 = vsel %vm166, %v1151, 0.0
    %1155 = vadd.xlane.f32.xlu0 %v1154
    %v1156 = vpop.xlane.xlu0 %1155
    %v1157 = vsel %vm166, %v1153, 0.0
    %1158 = vadd.xlane.f32.xlu0 %v1157
    %v1159 = vpop.xlane.xlu0 %1158
    %v1160 = vrcp.pop %v1156
    %v1161 = vmul.f32 %v1151, %v1160
    %v1162 = vrcp.pop %v1159
    %v1163 = vmul.f32 %v1153, %v1162
    %1164 = vrot.lane.b32.xlu0 %v149, 48
    %v1165 = vpop.permute.xlu0 %1164
    %v1168 = vsel %vm166, %v1161, 0
    %1170 = vmatprep.subr.mxu0 0.0
    %1171 = vmatpush1.msra.mxu0 0.0
    %1172 = vmatprep.subr.mxu0 0.0
    %1173 = vmatpush1.msra.mxu0 0.0
    %1174 = vmatprep.subr.mxu0 0.0
    %1175 = vmatpush1.msra.mxu0 0.0
    %1176 = vmatprep.subr.mxu0 0.0
    %1177 = vmatpush1.msra.mxu0 0.0
    %1178 = vmatprep.subr.mxu0 0.0
    %1179 = vmatpush1.msra.mxu0 0.0
    %1180 = vmatprep.subr.mxu0 0.0
    %1181 = vmatpush1.msra.mxu0 0.0
    %1182 = vmatprep.subr.mxu0 0.0
    %1183 = vmatpush1.msra.mxu0 0.0
    %1184 = vmatprep.subr.mxu0 0.0
    %1185 = vmatpush1.msra.mxu0 0.0
    %1186 = vmatprep.subr.mxu0 0.0
    %1187 = vmatpush1.msra.mxu0 0.0
    %1188 = vmatprep.subr.mxu0 0.0
    %1189 = vmatpush1.msra.mxu0 0.0
    %1190 = vmatprep.subr.mxu0 0.0
    %1191 = vmatpush1.msra.mxu0 0.0
    %1192 = vmatprep.subr.mxu0 0.0
    %1193 = vmatpush1.msra.mxu0 0.0
    %1194 = vmatprep.subr.mxu0 0.0
    %1195 = vmatpush1.msra.mxu0 0.0
    %1196 = vmatprep.subr.mxu0 0.0
    %1197 = vmatpush1.msra.mxu0 0.0
    %1198 = vmatprep.subr.mxu0 0.0
    %1199 = vmatpush1.msra.mxu0 0.0
    %1200 = vmatprep.subr.mxu0 0.0
    %1201 = vmatpush1.msra.mxu0 %v1165
    %1202 = vmatprep.subr.mxu0 0.0
    %1203 = vmatpush2.msra.mxu0 0.0
    %1204 = vmatprep.subr.mxu0 0.0
    %1205 = vmatpush2.msra.mxu0 0.0
    %1206 = vmatprep.subr.mxu0 0.0
    %1207 = vmatpush2.msra.mxu0 0.0
    %1208 = vmatprep.subr.mxu0 0.0
    %1209 = vmatpush2.msra.mxu0 0.0
    %1210 = vmatprep.subr.mxu0 0.0
    %1211 = vmatpush2.msra.mxu0 0.0
    %1212 = vmatprep.subr.mxu0 0.0
    %1213 = vmatpush2.msra.mxu0 0.0
    %1214 = vmatprep.subr.mxu0 0.0
    %1215 = vmatpush2.msra.mxu0 0.0
    %1216 = vmatprep.subr.mxu0 0.0
    %1217 = vmatpush2.msra.mxu0 0.0
    %1218 = vmatprep.subr.mxu0 0.0
    %1219 = vmatpush2.msra.mxu0 0.0
    %1220 = vmatprep.subr.mxu0 0.0
    %1221 = vmatpush2.msra.mxu0 0.0
    %1222 = vmatprep.subr.mxu0 0.0
    %1223 = vmatpush2.msra.mxu0 0.0
    %1224 = vmatprep.subr.mxu0 0.0
    %1225 = vmatpush2.msra.mxu0 0.0
    %1226 = vmatprep.subr.mxu0 0.0
    %1227 = vmatpush2.msra.mxu0 0.0
    %1228 = vmatprep.subr.mxu0 0.0
    %1229 = vmatpush2.msra.mxu0 0.0
    %1230 = vmatprep.subr.mxu0 0.0
    %1231 = vmatpush2.msra.mxu0 0.0
    %1232 = vmatprep.subr.mxu0 0.0
    %1233 = vmatpush2.msra.mxu0 0.0
    %1234 = vmatprep.mubr.f32.mxu0 0.0
    %1235 = vmatmul.mubr.f32.gmra.mxu0 %v1168
    %v1236 = vpop.f32.mrf.mxu0
    %v1237 = vadd.f32 0.0, %v1236
    %v1238 = vpop.f32.mrf.mxu0
    %1239 = vdwg.mxu0
    %1240 = vrot.lane.b32.xlu0 %v154, 48
    %v1241 = vpop.permute.xlu0 %1240
    %v1244 = vsel %vm166, %v1163, 0
    %1246 = vmatprep.subr.mxu0 0.0
    %1247 = vmatpush1.msra.mxu0 0.0
    %1248 = vmatprep.subr.mxu0 0.0
    %1249 = vmatpush1.msra.mxu0 0.0
    %1250 = vmatprep.subr.mxu0 0.0
    %1251 = vmatpush1.msra.mxu0 0.0
    %1252 = vmatprep.subr.mxu0 0.0
    %1253 = vmatpush1.msra.mxu0 0.0
    %1254 = vmatprep.subr.mxu0 0.0
    %1255 = vmatpush1.msra.mxu0 0.0
    %1256 = vmatprep.subr.mxu0 0.0
    %1257 = vmatpush1.msra.mxu0 0.0
    %1258 = vmatprep.subr.mxu0 0.0
    %1259 = vmatpush1.msra.mxu0 0.0
    %1260 = vmatprep.subr.mxu0 0.0
    %1261 = vmatpush1.msra.mxu0 0.0
    %1262 = vmatprep.subr.mxu0 0.0
    %1263 = vmatpush1.msra.mxu0 0.0
    %1264 = vmatprep.subr.mxu0 0.0
    %1265 = vmatpush1.msra.mxu0 0.0
    %1266 = vmatprep.subr.mxu0 0.0
    %1267 = vmatpush1.msra.mxu0 0.0
    %1268 = vmatprep.subr.mxu0 0.0
    %1269 = vmatpush1.msra.mxu0 0.0
    %1270 = vmatprep.subr.mxu0 0.0
    %1271 = vmatpush1.msra.mxu0 0.0
    %1272 = vmatprep.subr.mxu0 0.0
    %1273 = vmatpush1.msra.mxu0 0.0
    %1274 = vmatprep.subr.mxu0 0.0
    %1275 = vmatpush1.msra.mxu0 0.0
    %1276 = vmatprep.subr.mxu0 0.0
    %1277 = vmatpush1.msra.mxu0 %v1241
    %1278 = vmatprep.subr.mxu0 0.0
    %1279 = vmatpush2.msra.mxu0 0.0
    %1280 = vmatprep.subr.mxu0 0.0
    %1281 = vmatpush2.msra.mxu0 0.0
    %1282 = vmatprep.subr.mxu0 0.0
    %1283 = vmatpush2.msra.mxu0 0.0
    %1284 = vmatprep.subr.mxu0 0.0
    %1285 = vmatpush2.msra.mxu0 0.0
    %1286 = vmatprep.subr.mxu0 0.0
    %1287 = vmatpush2.msra.mxu0 0.0
    %1288 = vmatprep.subr.mxu0 0.0
    %1289 = vmatpush2.msra.mxu0 0.0
    %1290 = vmatprep.subr.mxu0 0.0
    %1291 = vmatpush2.msra.mxu0 0.0
    %1292 = vmatprep.subr.mxu0 0.0
    %1293 = vmatpush2.msra.mxu0 0.0
    %1294 = vmatprep.subr.mxu0 0.0
    %1295 = vmatpush2.msra.mxu0 0.0
    %1296 = vmatprep.subr.mxu0 0.0
    %1297 = vmatpush2.msra.mxu0 0.0
    %1298 = vmatprep.subr.mxu0 0.0
    %1299 = vmatpush2.msra.mxu0 0.0
    %1300 = vmatprep.subr.mxu0 0.0
    %1301 = vmatpush2.msra.mxu0 0.0
    %1302 = vmatprep.subr.mxu0 0.0
    %1303 = vmatpush2.msra.mxu0 0.0
    %1304 = vmatprep.subr.mxu0 0.0
    %1305 = vmatpush2.msra.mxu0 0.0
    %1306 = vmatprep.subr.mxu0 0.0
    %1307 = vmatpush2.msra.mxu0 0.0
    %1308 = vmatprep.subr.mxu0 0.0
    %1309 = vmatpush2.msra.mxu0 0.0
    %1310 = vmatprep.mubr.f32.mxu0 0.0
    %1311 = vmatmul.mubr.f32.gmra.mxu0 %v1244
    %v1312 = vpop.f32.mrf.mxu0
    %v1313 = vadd.f32 0.0, %v1312
    %v1314 = vpop.f32.mrf.mxu0
    %1315 = vdwg.mxu0
    %v1317 = vsel %vm166, %v1237, 0
    %v1320 = vsel %vm166, %v1313, 0
    %1322 = vmatprep.subr.mxu0 0.0
    %1323 = vmatpush1.msra.mxu0 0.0
    %1324 = vmatprep.subr.mxu0 0.0
    %1325 = vmatpush1.msra.mxu0 0.0
    %1326 = vmatprep.subr.mxu0 0.0
    %1327 = vmatpush1.msra.mxu0 0.0
    %1328 = vmatprep.subr.mxu0 0.0
    %1329 = vmatpush1.msra.mxu0 0.0
    %1330 = vmatprep.subr.mxu0 0.0
    %1331 = vmatpush1.msra.mxu0 0.0
    %1332 = vmatprep.subr.mxu0 0.0
    %1333 = vmatpush1.msra.mxu0 0.0
    %1334 = vmatprep.subr.mxu0 0.0
    %1335 = vmatpush1.msra.mxu0 0.0
    %1336 = vmatprep.subr.mxu0 0.0
    %1337 = vmatpush1.msra.mxu0 0.0
    %1338 = vmatprep.subr.mxu0 0.0
    %1339 = vmatpush1.msra.mxu0 0.0
    %1340 = vmatprep.subr.mxu0 0.0
    %1341 = vmatpush1.msra.mxu0 0.0
    %1342 = vmatprep.subr.mxu0 0.0
    %1343 = vmatpush1.msra.mxu0 0.0
    %1344 = vmatprep.subr.mxu0 0.0
    %1345 = vmatpush1.msra.mxu0 0.0
    %1346 = vmatprep.subr.mxu0 0.0
    %1347 = vmatpush1.msra.mxu0 0.0
    %1348 = vmatprep.subr.mxu0 0.0
    %1349 = vmatpush1.msra.mxu0 0.0
    %1350 = vmatprep.subr.mxu0 0.0
    %1351 = vmatpush1.msra.mxu0 0.0
    %1352 = vmatprep.subr.mxu0 0.0
    %1353 = vmatpush1.msra.mxu0 %v159
    %1354 = vmatprep.subr.mxu0 0.0
    %1355 = vmatpush2.msra.mxu0 0.0
    %1356 = vmatprep.subr.mxu0 0.0
    %1357 = vmatpush2.msra.mxu0 0.0
    %1358 = vmatprep.subr.mxu0 0.0
    %1359 = vmatpush2.msra.mxu0 0.0
    %1360 = vmatprep.subr.mxu0 0.0
    %1361 = vmatpush2.msra.mxu0 0.0
    %1362 = vmatprep.subr.mxu0 0.0
    %1363 = vmatpush2.msra.mxu0 0.0
    %1364 = vmatprep.subr.mxu0 0.0
    %1365 = vmatpush2.msra.mxu0 0.0
    %1366 = vmatprep.subr.mxu0 0.0
    %1367 = vmatpush2.msra.mxu0 0.0
    %1368 = vmatprep.subr.mxu0 0.0
    %1369 = vmatpush2.msra.mxu0 0.0
    %1370 = vmatprep.subr.mxu0 0.0
    %1371 = vmatpush2.msra.mxu0 0.0
    %1372 = vmatprep.subr.mxu0 0.0
    %1373 = vmatpush2.msra.mxu0 0.0
    %1374 = vmatprep.subr.mxu0 0.0
    %1375 = vmatpush2.msra.mxu0 0.0
    %1376 = vmatprep.subr.mxu0 0.0
    %1377 = vmatpush2.msra.mxu0 0.0
    %1378 = vmatprep.subr.mxu0 0.0
    %1379 = vmatpush2.msra.mxu0 0.0
    %1380 = vmatprep.subr.mxu0 0.0
    %1381 = vmatpush2.msra.mxu0 0.0
    %1382 = vmatprep.subr.mxu0 0.0
    %1383 = vmatpush2.msra.mxu0 0.0
    %1384 = vmatprep.subr.mxu0 0.0
    %1385 = vmatpush2.msra.mxu0 0.0
    %1386 = vmatprep.mubr.f32.mxu0 0.0
    %1387 = vmatmul.mubr.f32.gmra.mxu0 %v1317
    %v1388 = vpop.f32.mrf.mxu0
    %v1389 = vadd.f32 0.0, %v1388
    %v1390 = vpop.f32.mrf.mxu0
    %1391 = vmatprep.mubr.f32.mxu0 0.0
    %1392 = vmatmul.mubr.f32.gmra.mxu0 %v1320
    %v1393 = vpop.f32.mrf.mxu0
    %v1394 = vadd.f32 0.0, %v1393
    %v1395 = vpop.f32.mrf.mxu0
    %1396 = vdwg.mxu0
    %v1397 = vadd.f32 %v978, %v1389
    %v1398 = vadd.f32 %v983, %v1394
    %1399 = vrot.lane.b32.xlu0 %v161, 104
    %v1400 = vpop.permute.xlu0 %1399
    %1401 = vrot.lane.b32.xlu0 %v149, 72
    %v1402 = vpop.permute.xlu0 %1401
    %v1403 = vsel %vm166, %v1400, 0
    %v1405 = vsel %vm166, %v1402, 0
    %1407 = vmatprep.subr.mxu0 0.0
    %1408 = vmatpush1.xpose.msra.mxu0 0.0
    %1409 = vmatprep.subr.mxu0 0.0
    %1410 = vmatpush1.xpose.msra.mxu0 0.0
    %1411 = vmatprep.subr.mxu0 0.0
    %1412 = vmatpush1.xpose.msra.mxu0 0.0
    %1413 = vmatprep.subr.mxu0 0.0
    %1414 = vmatpush1.xpose.msra.mxu0 0.0
    %1415 = vmatprep.subr.mxu0 0.0
    %1416 = vmatpush1.xpose.msra.mxu0 0.0
    %1417 = vmatprep.subr.mxu0 0.0
    %1418 = vmatpush1.xpose.msra.mxu0 0.0
    %1419 = vmatprep.subr.mxu0 0.0
    %1420 = vmatpush1.xpose.msra.mxu0 0.0
    %1421 = vmatprep.subr.mxu0 0.0
    %1422 = vmatpush1.xpose.msra.mxu0 0.0
    %1423 = vmatprep.subr.mxu0 0.0
    %1424 = vmatpush1.xpose.msra.mxu0 0.0
    %1425 = vmatprep.subr.mxu0 0.0
    %1426 = vmatpush1.xpose.msra.mxu0 0.0
    %1427 = vmatprep.subr.mxu0 0.0
    %1428 = vmatpush1.xpose.msra.mxu0 0.0
    %1429 = vmatprep.subr.mxu0 0.0
    %1430 = vmatpush1.xpose.msra.mxu0 0.0
    %1431 = vmatprep.subr.mxu0 0.0
    %1432 = vmatpush1.xpose.msra.mxu0 0.0
    %1433 = vmatprep.subr.mxu0 0.0
    %1434 = vmatpush1.xpose.msra.mxu0 0.0
    %1435 = vmatprep.subr.mxu0 0.0
    %1436 = vmatpush1.xpose.msra.mxu0 0.0
    %1437 = vmatprep.subr.mxu0 0.0
    %1438 = vmatpush1.xpose.msra.mxu0 %v1405
    %1439 = vmatprep.subr.mxu0 0.0
    %1440 = vmatpush2.xpose.msra.mxu0 0.0
    %1441 = vmatprep.subr.mxu0 0.0
    %1442 = vmatpush2.xpose.msra.mxu0 0.0
    %1443 = vmatprep.subr.mxu0 0.0
    %1444 = vmatpush2.xpose.msra.mxu0 0.0
    %1445 = vmatprep.subr.mxu0 0.0
    %1446 = vmatpush2.xpose.msra.mxu0 0.0
    %1447 = vmatprep.subr.mxu0 0.0
    %1448 = vmatpush2.xpose.msra.mxu0 0.0
    %1449 = vmatprep.subr.mxu0 0.0
    %1450 = vmatpush2.xpose.msra.mxu0 0.0
    %1451 = vmatprep.subr.mxu0 0.0
    %1452 = vmatpush2.xpose.msra.mxu0 0.0
    %1453 = vmatprep.subr.mxu0 0.0
    %1454 = vmatpush2.xpose.msra.mxu0 0.0
    %1455 = vmatprep.subr.mxu0 0.0
    %1456 = vmatpush2.xpose.msra.mxu0 0.0
    %1457 = vmatprep.subr.mxu0 0.0
    %1458 = vmatpush2.xpose.msra.mxu0 0.0
    %1459 = vmatprep.subr.mxu0 0.0
    %1460 = vmatpush2.xpose.msra.mxu0 0.0
    %1461 = vmatprep.subr.mxu0 0.0
    %1462 = vmatpush2.xpose.msra.mxu0 0.0
    %1463 = vmatprep.subr.mxu0 0.0
    %1464 = vmatpush2.xpose.msra.mxu0 0.0
    %1465 = vmatprep.subr.mxu0 0.0
    %1466 = vmatpush2.xpose.msra.mxu0 0.0
    %1467 = vmatprep.subr.mxu0 0.0
    %1468 = vmatpush2.xpose.msra.mxu0 0.0
    %1469 = vmatprep.subr.mxu0 0.0
    %1470 = vmatpush2.xpose.msra.mxu0 0.0
    %1471 = vmatprep.mubr.f32.mxu0 0.0
    %1472 = vmatmul.mubr.f32.gmra.mxu0 %v1403
    %v1473 = vpop.f32.mrf.mxu0
    %v1474 = vadd.f32 0.0, %v1473
    %v1475 = vpop.f32.mrf.mxu0
    %1476 = vdwg.mxu0
    %1477 = vrot.lane.b32.xlu0 %v162, 104
    %v1478 = vpop.permute.xlu0 %1477
    %1479 = vrot.lane.b32.xlu0 %v154, 72
    %v1480 = vpop.permute.xlu0 %1479
    %v1481 = vsel %vm166, %v1478, 0
    %v1483 = vsel %vm166, %v1480, 0
    %1485 = vmatprep.subr.mxu0 0.0
    %1486 = vmatpush1.xpose.msra.mxu0 0.0
    %1487 = vmatprep.subr.mxu0 0.0
    %1488 = vmatpush1.xpose.msra.mxu0 0.0
    %1489 = vmatprep.subr.mxu0 0.0
    %1490 = vmatpush1.xpose.msra.mxu0 0.0
    %1491 = vmatprep.subr.mxu0 0.0
    %1492 = vmatpush1.xpose.msra.mxu0 0.0
    %1493 = vmatprep.subr.mxu0 0.0
    %1494 = vmatpush1.xpose.msra.mxu0 0.0
    %1495 = vmatprep.subr.mxu0 0.0
    %1496 = vmatpush1.xpose.msra.mxu0 0.0
    %1497 = vmatprep.subr.mxu0 0.0
    %1498 = vmatpush1.xpose.msra.mxu0 0.0
    %1499 = vmatprep.subr.mxu0 0.0
    %1500 = vmatpush1.xpose.msra.mxu0 0.0
    %1501 = vmatprep.subr.mxu0 0.0
    %1502 = vmatpush1.xpose.msra.mxu0 0.0
    %1503 = vmatprep.subr.mxu0 0.0
    %1504 = vmatpush1.xpose.msra.mxu0 0.0
    %1505 = vmatprep.subr.mxu0 0.0
    %1506 = vmatpush1.xpose.msra.mxu0 0.0
    %1507 = vmatprep.subr.mxu0 0.0
    %1508 = vmatpush1.xpose.msra.mxu0 0.0
    %1509 = vmatprep.subr.mxu0 0.0
    %1510 = vmatpush1.xpose.msra.mxu0 0.0
    %1511 = vmatprep.subr.mxu0 0.0
    %1512 = vmatpush1.xpose.msra.mxu0 0.0
    %1513 = vmatprep.subr.mxu0 0.0
    %1514 = vmatpush1.xpose.msra.mxu0 0.0
    %1515 = vmatprep.subr.mxu0 0.0
    %1516 = vmatpush1.xpose.msra.mxu0 %v1483
    %1517 = vmatprep.subr.mxu0 0.0
    %1518 = vmatpush2.xpose.msra.mxu0 0.0
    %1519 = vmatprep.subr.mxu0 0.0
    %1520 = vmatpush2.xpose.msra.mxu0 0.0
    %1521 = vmatprep.subr.mxu0 0.0
    %1522 = vmatpush2.xpose.msra.mxu0 0.0
    %1523 = vmatprep.subr.mxu0 0.0
    %1524 = vmatpush2.xpose.msra.mxu0 0.0
    %1525 = vmatprep.subr.mxu0 0.0
    %1526 = vmatpush2.xpose.msra.mxu0 0.0
    %1527 = vmatprep.subr.mxu0 0.0
    %1528 = vmatpush2.xpose.msra.mxu0 0.0
    %1529 = vmatprep.subr.mxu0 0.0
    %1530 = vmatpush2.xpose.msra.mxu0 0.0
    %1531 = vmatprep.subr.mxu0 0.0
    %1532 = vmatpush2.xpose.msra.mxu0 0.0
    %1533 = vmatprep.subr.mxu0 0.0
    %1534 = vmatpush2.xpose.msra.mxu0 0.0
    %1535 = vmatprep.subr.mxu0 0.0
    %1536 = vmatpush2.xpose.msra.mxu0 0.0
    %1537 = vmatprep.subr.mxu0 0.0
    %1538 = vmatpush2.xpose.msra.mxu0 0.0
    %1539 = vmatprep.subr.mxu0 0.0
    %1540 = vmatpush2.xpose.msra.mxu0 0.0
    %1541 = vmatprep.subr.mxu0 0.0
    %1542 = vmatpush2.xpose.msra.mxu0 0.0
    %1543 = vmatprep.subr.mxu0 0.0
    %1544 = vmatpush2.xpose.msra.mxu0 0.0
    %1545 = vmatprep.subr.mxu0 0.0
    %1546 = vmatpush2.xpose.msra.mxu0 0.0
    %1547 = vmatprep.subr.mxu0 0.0
    %1548 = vmatpush2.xpose.msra.mxu0 0.0
    %1549 = vmatprep.mubr.f32.mxu0 0.0
    %1550 = vmatmul.mubr.f32.gmra.mxu0 %v1481
    %v1551 = vpop.f32.mrf.mxu0
    %v1552 = vadd.f32 0.0, %v1551
    %v1553 = vpop.f32.mrf.mxu0
    %1554 = vdwg.mxu0
    %v1555 = vsel %vm166, %v1474, -inf
    %1556 = vmax.xlane.f32.xlu0 %v1555
    %v1557 = vpop.xlane.xlu0 %1556
    %v1558 = vsel %vm166, %v1552, -inf
    %1559 = vmax.xlane.f32.xlu0 %v1558
    %v1560 = vpop.xlane.xlu0 %1559
    %v1561 = vsub.f32 %v1474, %v1557
    %v1562 = vsub.f32 %v1552, %v1560
    %v1563 = vmul.f32 %v1561, 1.442695
    %v1564 = vpow.pop %v1563
    %v1565 = vmul.f32 %v1562, 1.442695
    %v1566 = vpow.pop %v1565
    %v1567 = vsel %vm166, %v1564, 0.0
    %1568 = vadd.xlane.f32.xlu0 %v1567
    %v1569 = vpop.xlane.xlu0 %1568
    %v1570 = vsel %vm166, %v1566, 0.0
    %1571 = vadd.xlane.f32.xlu0 %v1570
    %v1572 = vpop.xlane.xlu0 %1571
    %v1573 = vrcp.pop %v1569
    %v1574 = vmul.f32 %v1564, %v1573
    %v1575 = vrcp.pop %v1572
    %v1576 = vmul.f32 %v1566, %v1575
    %1577 = vrot.lane.b32.xlu0 %v149, 40
    %v1578 = vpop.permute.xlu0 %1577
    %v1581 = vsel %vm166, %v1574, 0
    %1583 = vmatprep.subr.mxu0 0.0
    %1584 = vmatpush1.msra.mxu0 0.0
    %1585 = vmatprep.subr.mxu0 0.0
    %1586 = vmatpush1.msra.mxu0 0.0
    %1587 = vmatprep.subr.mxu0 0.0
    %1588 = vmatpush1.msra.mxu0 0.0
    %1589 = vmatprep.subr.mxu0 0.0
    %1590 = vmatpush1.msra.mxu0 0.0
    %1591 = vmatprep.subr.mxu0 0.0
    %1592 = vmatpush1.msra.mxu0 0.0
    %1593 = vmatprep.subr.mxu0 0.0
    %1594 = vmatpush1.msra.mxu0 0.0
    %1595 = vmatprep.subr.mxu0 0.0
    %1596 = vmatpush1.msra.mxu0 0.0
    %1597 = vmatprep.subr.mxu0 0.0
    %1598 = vmatpush1.msra.mxu0 0.0
    %1599 = vmatprep.subr.mxu0 0.0
    %1600 = vmatpush1.msra.mxu0 0.0
    %1601 = vmatprep.subr.mxu0 0.0
    %1602 = vmatpush1.msra.mxu0 0.0
    %1603 = vmatprep.subr.mxu0 0.0
    %1604 = vmatpush1.msra.mxu0 0.0
    %1605 = vmatprep.subr.mxu0 0.0
    %1606 = vmatpush1.msra.mxu0 0.0
    %1607 = vmatprep.subr.mxu0 0.0
    %1608 = vmatpush1.msra.mxu0 0.0
    %1609 = vmatprep.subr.mxu0 0.0
    %1610 = vmatpush1.msra.mxu0 0.0
    %1611 = vmatprep.subr.mxu0 0.0
    %1612 = vmatpush1.msra.mxu0 0.0
    %1613 = vmatprep.subr.mxu0 0.0
    %1614 = vmatpush1.msra.mxu0 %v1578
    %1615 = vmatprep.subr.mxu0 0.0
    %1616 = vmatpush2.msra.mxu0 0.0
    %1617 = vmatprep.subr.mxu0 0.0
    %1618 = vmatpush2.msra.mxu0 0.0
    %1619 = vmatprep.subr.mxu0 0.0
    %1620 = vmatpush2.msra.mxu0 0.0
    %1621 = vmatprep.subr.mxu0 0.0
    %1622 = vmatpush2.msra.mxu0 0.0
    %1623 = vmatprep.subr.mxu0 0.0
    %1624 = vmatpush2.msra.mxu0 0.0
    %1625 = vmatprep.subr.mxu0 0.0
    %1626 = vmatpush2.msra.mxu0 0.0
    %1627 = vmatprep.subr.mxu0 0.0
    %1628 = vmatpush2.msra.mxu0 0.0
    %1629 = vmatprep.subr.mxu0 0.0
    %1630 = vmatpush2.msra.mxu0 0.0
    %1631 = vmatprep.subr.mxu0 0.0
    %1632 = vmatpush2.msra.mxu0 0.0
    %1633 = vmatprep.subr.mxu0 0.0
    %1634 = vmatpush2.msra.mxu0 0.0
    %1635 = vmatprep.subr.mxu0 0.0
    %1636 = vmatpush2.msra.mxu0 0.0
    %1637 = vmatprep.subr.mxu0 0.0
    %1638 = vmatpush2.msra.mxu0 0.0
    %1639 = vmatprep.subr.mxu0 0.0
    %1640 = vmatpush2.msra.mxu0 0.0
    %1641 = vmatprep.subr.mxu0 0.0
    %1642 = vmatpush2.msra.mxu0 0.0
    %1643 = vmatprep.subr.mxu0 0.0
    %1644 = vmatpush2.msra.mxu0 0.0
    %1645 = vmatprep.subr.mxu0 0.0
    %1646 = vmatpush2.msra.mxu0 0.0
    %1647 = vmatprep.mubr.f32.mxu0 0.0
    %1648 = vmatmul.mubr.f32.gmra.mxu0 %v1581
    %v1649 = vpop.f32.mrf.mxu0
    %v1650 = vadd.f32 0.0, %v1649
    %v1651 = vpop.f32.mrf.mxu0
    %1652 = vdwg.mxu0
    %1653 = vrot.lane.b32.xlu0 %v154, 40
    %v1654 = vpop.permute.xlu0 %1653
    %v1657 = vsel %vm166, %v1576, 0
    %1659 = vmatprep.subr.mxu0 0.0
    %1660 = vmatpush1.msra.mxu0 0.0
    %1661 = vmatprep.subr.mxu0 0.0
    %1662 = vmatpush1.msra.mxu0 0.0
    %1663 = vmatprep.subr.mxu0 0.0
    %1664 = vmatpush1.msra.mxu0 0.0
    %1665 = vmatprep.subr.mxu0 0.0
    %1666 = vmatpush1.msra.mxu0 0.0
    %1667 = vmatprep.subr.mxu0 0.0
    %1668 = vmatpush1.msra.mxu0 0.0
    %1669 = vmatprep.subr.mxu0 0.0
    %1670 = vmatpush1.msra.mxu0 0.0
    %1671 = vmatprep.subr.mxu0 0.0
    %1672 = vmatpush1.msra.mxu0 0.0
    %1673 = vmatprep.subr.mxu0 0.0
    %1674 = vmatpush1.msra.mxu0 0.0
    %1675 = vmatprep.subr.mxu0 0.0
    %1676 = vmatpush1.msra.mxu0 0.0
    %1677 = vmatprep.subr.mxu0 0.0
    %1678 = vmatpush1.msra.mxu0 0.0
    %1679 = vmatprep.subr.mxu0 0.0
    %1680 = vmatpush1.msra.mxu0 0.0
    %1681 = vmatprep.subr.mxu0 0.0
    %1682 = vmatpush1.msra.mxu0 0.0
    %1683 = vmatprep.subr.mxu0 0.0
    %1684 = vmatpush1.msra.mxu0 0.0
    %1685 = vmatprep.subr.mxu0 0.0
    %1686 = vmatpush1.msra.mxu0 0.0
    %1687 = vmatprep.subr.mxu0 0.0
    %1688 = vmatpush1.msra.mxu0 0.0
    %1689 = vmatprep.subr.mxu0 0.0
    %1690 = vmatpush1.msra.mxu0 %v1654
    %1691 = vmatprep.subr.mxu0 0.0
    %1692 = vmatpush2.msra.mxu0 0.0
    %1693 = vmatprep.subr.mxu0 0.0
    %1694 = vmatpush2.msra.mxu0 0.0
    %1695 = vmatprep.subr.mxu0 0.0
    %1696 = vmatpush2.msra.mxu0 0.0
    %1697 = vmatprep.subr.mxu0 0.0
    %1698 = vmatpush2.msra.mxu0 0.0
    %1699 = vmatprep.subr.mxu0 0.0
    %1700 = vmatpush2.msra.mxu0 0.0
    %1701 = vmatprep.subr.mxu0 0.0
    %1702 = vmatpush2.msra.mxu0 0.0
    %1703 = vmatprep.subr.mxu0 0.0
    %1704 = vmatpush2.msra.mxu0 0.0
    %1705 = vmatprep.subr.mxu0 0.0
    %1706 = vmatpush2.msra.mxu0 0.0
    %1707 = vmatprep.subr.mxu0 0.0
    %1708 = vmatpush2.msra.mxu0 0.0
    %1709 = vmatprep.subr.mxu0 0.0
    %1710 = vmatpush2.msra.mxu0 0.0
    %1711 = vmatprep.subr.mxu0 0.0
    %1712 = vmatpush2.msra.mxu0 0.0
    %1713 = vmatprep.subr.mxu0 0.0
    %1714 = vmatpush2.msra.mxu0 0.0
    %1715 = vmatprep.subr.mxu0 0.0
    %1716 = vmatpush2.msra.mxu0 0.0
    %1717 = vmatprep.subr.mxu0 0.0
    %1718 = vmatpush2.msra.mxu0 0.0
    %1719 = vmatprep.subr.mxu0 0.0
    %1720 = vmatpush2.msra.mxu0 0.0
    %1721 = vmatprep.subr.mxu0 0.0
    %1722 = vmatpush2.msra.mxu0 0.0
    %1723 = vmatprep.mubr.f32.mxu0 0.0
    %1724 = vmatmul.mubr.f32.gmra.mxu0 %v1657
    %v1725 = vpop.f32.mrf.mxu0
    %v1726 = vadd.f32 0.0, %v1725
    %v1727 = vpop.f32.mrf.mxu0
    %1728 = vdwg.mxu0
    %v1730 = vsel %vm166, %v1650, 0
    %v1733 = vsel %vm166, %v1726, 0
    %1735 = vmatprep.subr.mxu0 0.0
    %1736 = vmatpush1.msra.mxu0 0.0
    %1737 = vmatprep.subr.mxu0 0.0
    %1738 = vmatpush1.msra.mxu0 0.0
    %1739 = vmatprep.subr.mxu0 0.0
    %1740 = vmatpush1.msra.mxu0 0.0
    %1741 = vmatprep.subr.mxu0 0.0
    %1742 = vmatpush1.msra.mxu0 0.0
    %1743 = vmatprep.subr.mxu0 0.0
    %1744 = vmatpush1.msra.mxu0 0.0
    %1745 = vmatprep.subr.mxu0 0.0
    %1746 = vmatpush1.msra.mxu0 0.0
    %1747 = vmatprep.subr.mxu0 0.0
    %1748 = vmatpush1.msra.mxu0 0.0
    %1749 = vmatprep.subr.mxu0 0.0
    %1750 = vmatpush1.msra.mxu0 0.0
    %1751 = vmatprep.subr.mxu0 0.0
    %1752 = vmatpush1.msra.mxu0 0.0
    %1753 = vmatprep.subr.mxu0 0.0
    %1754 = vmatpush1.msra.mxu0 0.0
    %1755 = vmatprep.subr.mxu0 0.0
    %1756 = vmatpush1.msra.mxu0 0.0
    %1757 = vmatprep.subr.mxu0 0.0
    %1758 = vmatpush1.msra.mxu0 0.0
    %1759 = vmatprep.subr.mxu0 0.0
    %1760 = vmatpush1.msra.mxu0 0.0
    %1761 = vmatprep.subr.mxu0 0.0
    %1762 = vmatpush1.msra.mxu0 0.0
    %1763 = vmatprep.subr.mxu0 0.0
    %1764 = vmatpush1.msra.mxu0 0.0
    %1765 = vmatprep.subr.mxu0 0.0
    %1766 = vmatpush1.msra.mxu0 %v160
    %1767 = vmatprep.subr.mxu0 0.0
    %1768 = vmatpush2.msra.mxu0 0.0
    %1769 = vmatprep.subr.mxu0 0.0
    %1770 = vmatpush2.msra.mxu0 0.0
    %1771 = vmatprep.subr.mxu0 0.0
    %1772 = vmatpush2.msra.mxu0 0.0
    %1773 = vmatprep.subr.mxu0 0.0
    %1774 = vmatpush2.msra.mxu0 0.0
    %1775 = vmatprep.subr.mxu0 0.0
    %1776 = vmatpush2.msra.mxu0 0.0
    %1777 = vmatprep.subr.mxu0 0.0
    %1778 = vmatpush2.msra.mxu0 0.0
    %1779 = vmatprep.subr.mxu0 0.0
    %1780 = vmatpush2.msra.mxu0 0.0
    %1781 = vmatprep.subr.mxu0 0.0
    %1782 = vmatpush2.msra.mxu0 0.0
    %1783 = vmatprep.subr.mxu0 0.0
    %1784 = vmatpush2.msra.mxu0 0.0
    %1785 = vmatprep.subr.mxu0 0.0
    %1786 = vmatpush2.msra.mxu0 0.0
    %1787 = vmatprep.subr.mxu0 0.0
    %1788 = vmatpush2.msra.mxu0 0.0
    %1789 = vmatprep.subr.mxu0 0.0
    %1790 = vmatpush2.msra.mxu0 0.0
    %1791 = vmatprep.subr.mxu0 0.0
    %1792 = vmatpush2.msra.mxu0 0.0
    %1793 = vmatprep.subr.mxu0 0.0
    %1794 = vmatpush2.msra.mxu0 0.0
    %1795 = vmatprep.subr.mxu0 0.0
    %1796 = vmatpush2.msra.mxu0 0.0
    %1797 = vmatprep.subr.mxu0 0.0
    %1798 = vmatpush2.msra.mxu0 0.0
    %1799 = vmatprep.mubr.f32.mxu0 0.0
    %1800 = vmatmul.mubr.f32.gmra.mxu0 %v1730
    %v1801 = vpop.f32.mrf.mxu0
    %v1802 = vadd.f32 0.0, %v1801
    %v1803 = vpop.f32.mrf.mxu0
    %1804 = vmatprep.mubr.f32.mxu0 0.0
    %1805 = vmatmul.mubr.f32.gmra.mxu0 %v1733
    %v1806 = vpop.f32.mrf.mxu0
    %v1807 = vadd.f32 0.0, %v1806
    %v1808 = vpop.f32.mrf.mxu0
    %1809 = vdwg.mxu0
    %v1810 = vadd.f32 %v1397, %v1802
    %v1811 = vadd.f32 %v1398, %v1807
    %v1812 = vld [vmem:[%s4] sm:$0x1]
    %v1814 = vlaneseq
    %v1815 = vshrl.u32 %v1814, 7
    %v1816 = vsub.s32 0, %v1815
    %v1817 = vrot.slane %v1812, %v1816
    %v1819 = vadd.f32 %v1810, %v1817
    %v1820 = vadd.f32 %v1811, %v1817
    %v1821 = vadd.f32 %v1819, %v62
    %v1822 = vadd.f32 %v1820, %v63
    %1823 = vst.msk [vmem:[#allocation8] sm:$0xff] %vm75, %v1821
    %1824 = vst.msk [vmem:[#allocation8 + $0x8] sm:$0xff] %vm75, %v1822
    // Predicated region
    $region34: #{tpu_custom_call.1} parent=1 // pred_check
      _
    $region35: #{tpu_custom_call.1} parent=1 // pred_check_branch
      %1826 = sbr.rel (0) target = $region37
    $region36: #{tpu_custom_call.1} parent=1 // pred_region
      %s1828 = ssub.s32 256, 256
      %1829 = vsyncadd [#allocation4], %s1828
      %s1830 = sshll.u32 [#allocation8], 4
      %s1831 = int_to_ptr.vmem [resolvable:$true] %s1830
      %1836 = dma.vmem_to_hbm [thread:$0]  %s1831, 256, %s5, [#allocation4], 128, 128, 8
    $region37: #{tpu_custom_call.1} parent=1 // pred_fallthru
      _
    // Predicated region
    $region38: #{tpu_custom_call.1} parent=1 // pred_check
      _
    $region39: #{tpu_custom_call.1} parent=1 // pred_check_branch
      %1838 = sbr.rel (0) target = $region41
    $region40: #{tpu_custom_call.1} parent=1 // pred_region
      %1839 = dma.done [#allocation4], 256
    $region41: #{tpu_custom_call.1} parent=1 // pred_fallthru
      _
    %1840 = vsyncpa [#allocation3], 1
    %1841 = vsyncpa [#allocation6], 1
    %1842 = vsyncpa [#allocation4], 1

</llo_original>
